<compile_context>
chip_gen: v7x
topology: tpu7x:2x2x1
jax: 0.10.0
libtpu: 0.0.40
codegen_flags: <defaults>
</compile_context>

<pallas_src>
import jax
import jax.numpy as jnp
from jax import lax
from jax.experimental import pallas as pl
from jax.experimental.pallas import tpu as pltpu

LANES = 128
SUBLANES = 8
CHUNK_ROWS = 256            # rows per inner fori_loop iteration (128 KiB f32)


def _round_up(a: int, b: int) -> int:
    return ((a + b - 1) // b) * b


def _cdiv(a: int, b: int) -> int:
    return (a + b - 1) // b


def _tpu_defaults():
    """(num_parallel, tile_rows, use_core_parallel) for the local TPU generation."""
    try:
        kind = jax.devices()[0].device_kind.lower()
    except Exception:
        kind = ""
    if "7" in kind:            # v7x: 2 TensorCores/chip, ~2.3x v6e HBM bandwidth
        return 2, 8192, True   # 4 MiB f32 blocks amortize the ~0.35us/step cost
    return 1, 2048, False      # v5e / v6e: 1 TC; 1 MiB blocks ~ HBM roofline


def _make_kernel(tile_rows: int, inner: int, rows_valid: int, chunk: int):
    """Kernel closed over static tiling parameters."""
    n_chunks = tile_rows // chunk
    unroll = True if n_chunks <= 32 else 8

    def accumulate(x_ref, row0, masked):
        # Chunked accumulation: bounded VMEM temporaries (one chunk + two
        # (8,128) vreg accumulators live), regardless of tile_rows.
        def body(i, carry):
            s, q = carry
            start = pl.multiple_of(i * chunk, chunk)
            xi = x_ref[pl.ds(start, chunk), :].astype(jnp.float32)
            if masked:
                # Global row index of every element in this chunk; rows past
                # the real array end (garbage from the partial DMA) are zeroed.
                ridx = row0 + start + lax.broadcasted_iota(
                    jnp.int32, (chunk, LANES), 0)
                xi = jnp.where(ridx < rows_valid, xi, 0.0)
            xg = xi.reshape(chunk // SUBLANES, SUBLANES, LANES)
            s = s + jnp.sum(xg, axis=0)
            q = q + jnp.sum(xg * xg, axis=0)
            return s, q

        zeros = jnp.zeros((SUBLANES, LANES), jnp.float32)
        return lax.fori_loop(0, n_chunks, body, (zeros, zeros), unroll=unroll)

    def kernel(x_ref, sum_ref, sq_ref):
        p = pl.program_id(0)
        j = pl.program_id(1)

        # Zero this core's resident accumulators at the first reduction step.
        @pl.when(j == 0)
        def _():
            sum_ref[...] = jnp.zeros_like(sum_ref)
            sq_ref[...] = jnp.zeros_like(sq_ref)

        # Global (unclamped) block index / starting row of this grid step.
        blk = p * inner + j
        row0 = blk * tile_rows
        is_full = (row0 + tile_rows) <= rows_valid

        @pl.when(is_full)
        def _():
            s, q = accumulate(x_ref, row0, masked=False)
            sum_ref[...] += s
            sq_ref[...] += q

        # Partial (or fully out-of-range) block: runs at most once per core,
        # so the extra iota/where cost is negligible.
        @pl.when(jnp.logical_not(is_full))
        def _():
            s, q = accumulate(x_ref, row0, masked=True)
            sum_ref[...] += s
            sq_ref[...] += q

    return kernel


def mean_variance_loss(x: jax.Array, *, tile_rows: int | None = None,
                       num_parallel: int | None = None,
                       min_pallas_bytes: int = 128 * 1024) -> jax.Array:
    """Computes (mean(x))^2 + (var(x, ddof=1) - 1)^2 over all elements of x."""
    n = x.size
    itemsize = jnp.dtype(x.dtype).itemsize

    # Small-input fast path: pallas dispatch + pipeline setup (several us)
    # dwarfs the actual work for tiny latents; plain jnp is strictly faster.
    if n * itemsize < min_pallas_bytes:
        xf = jnp.asarray(x, jnp.float32)
        mean = jnp.mean(xf)
        var = jnp.var(xf, ddof=1)
        return mean * mean + (var - 1.0) ** 2

    p_def, tr_def, core_par = _tpu_defaults()
    P = num_parallel if num_parallel is not None else p_def
    tr_target = tile_rows if tile_rows is not None else tr_def

    # (rows, 128) view of the flattened input. This is a pure bitcast (no HBM
    # copy) whenever numel % 128 == 0, which holds for realistic latents.
    xf = jnp.ravel(x)
    if n % LANES != 0:
        # TODO(synk): rare tail case -- one padded copy. Zeros contribute
        # nothing to sum / sum-of-squares; the true n stays in the denominators.
        xf = jnp.pad(xf, (0, _round_up(n, LANES) - n))
    rows = xf.size // LANES
    x2d = xf.reshape(rows, LANES)

    # Row-tile geometry: tile <= rows (never an over-sized block), multiple of
    # the in-kernel chunk so the fori_loop is rectangular.
    tr = max(SUBLANES, (min(tr_target, rows) // SUBLANES) * SUBLANES)
    chunk = min(CHUNK_ROWS, tr)
    tr = max(chunk, (tr // chunk) * chunk)

    num_blocks = _cdiv(rows, tr)          # blocks holding >= 1 valid row
    P = max(1, min(P, num_blocks))
    inner = _cdiv(num_blocks, P)
    last_blk = num_blocks - 1

    out_shape = (
        jax.ShapeDtypeStruct((P * SUBLANES, LANES), jnp.float32),  # partial sum
        jax.ShapeDtypeStruct((P * SUBLANES, LANES), jnp.float32),  # partial sum x^2
    )
    cost = pl.CostEstimate(
        flops=3 * n,
        transcendentals=0,
        bytes_accessed=n * itemsize + 2 * P * SUBLANES * LANES * 4,
    )

    # Clamp the block index so every DMA stays in bounds; grid steps past the
    # last valid block re-read it and are zeroed by the in-kernel row mask.
    def x_index_map(p, j):
        return (jnp.minimum(p * inner + j, last_blk), 0)

    def run(lead_sem):
        return pl.pallas_call(
            _make_kernel(tr, inner, rows, chunk),
            out_shape=out_shape,
            grid_spec=pltpu.PrefetchScalarGridSpec(
                num_scalar_prefetch=0,
                grid=(P, inner),
                in_specs=[pl.BlockSpec((tr, LANES), x_index_map)],
                out_specs=(
                    pl.BlockSpec((SUBLANES, LANES), lambda p, j: (p, 0)),
                    pl.BlockSpec((SUBLANES, LANES), lambda p, j: (p, 0)),
                ),
            ),
            compiler_params=pltpu.CompilerParams(
                dimension_semantics=(lead_sem, "arbitrary"),
            ),
            cost_estimate=cost,
        )(x2d)

    if P > 1 and core_par:
        # v7x: shard the leading axis across the two TensorCores.
        try:
            psum, psq = run(getattr(pltpu, "CORE_PARALLEL", "parallel"))
        except Exception:
            psum, psq = run("parallel")    # safe fallback
    else:
        psum, psq = run("arbitrary" if P == 1 else "parallel")

    # Tiny scalar finalize: cross-lane combine of the (P*8, 128) partials.
    total_sum = jnp.sum(psum)
    total_sq = jnp.sum(psq)
    n_f = jnp.float32(n)
    mean = total_sum / n_f
    var = (total_sq - n_f * mean * mean) / (n_f - 1.0)
    return mean * mean + (var - 1.0) * (var - 1.0)


if __name__ == "__main__":
    key = jax.random.PRNGKey(0)
    k1, k2, k3, k4 = jax.random.split(key, 4)

    def reference(t):
        tf = jnp.asarray(t, jnp.float32)
        return jnp.mean(tf) ** 2 + (jnp.var(tf, ddof=1) - 1.0) ** 2

    # 1) SD3-latent-like tensor, large enough to take the Pallas path.
    x = jax.random.normal(k1, (2, 16, 64, 64), dtype=jnp.float32)
    loss = mean_variance_loss(x)
    jax.block_until_ready(loss)
    assert jnp.allclose(loss, reference(x), rtol=1e-4, atol=1e-5), (loss, reference(x))

    # 2) Multi-block Pallas path with a partial last block: exercises the
    #    in-kernel tail mask (no padded copy of the input).
    y = 0.5 + 1.5 * jax.random.normal(k2, (1, 2698, 128), dtype=jnp.float32)
    loss_y = mean_variance_loss(y)
    jax.block_until_ready(loss_y)
    assert jnp.allclose(loss_y, reference(y), rtol=1e-4, atol=1e-5), (loss_y, reference(y))

    # 3) bf16 input streams at narrow width through the same kernel.
    z = jax.random.normal(k3, (4, 16, 64, 64), dtype=jnp.bfloat16)
    loss_z = mean_variance_loss(z)
    jax.block_until_ready(loss_z)
    assert jnp.allclose(loss_z, reference(z), rtol=1e-3, atol=1e-3), (loss_z, reference(z))

    # 4) Small / oddly-shaped inputs take the jnp fast path.
    w = jax.random.normal(k4, (2, 4, 16, 16), dtype=jnp.float32)
    loss_w = mean_variance_loss(w)
    jax.block_until_ready(loss_w)
    assert jnp.allclose(loss_w, reference(w), rtol=1e-5, atol=1e-6), (loss_w, reference(w))

    print("KERNEL_OK")
</pallas_src>

<mosaic_0001>
module attributes {stable_mosaic.version = 11 : i64} {
  func.func @kernel(%arg0: i32, %arg1: i32, %arg2: memref<1024x128xf32, #tpu.memory_space<vmem>>, %arg3: memref<8x128xf32, #tpu.memory_space<vmem>>, %arg4: memref<8x128xf32, #tpu.memory_space<vmem>>) attributes {dimension_semantics = [#tpu.dimension_semantics<arbitrary>, #tpu.dimension_semantics<arbitrary>], iteration_bounds = array<i64: 1, 1>, scalar_prefetch = 0 : i64, scratch_operands = 0 : i64, tpu.core_type = #tpu.core_type<tc>, window_params = [{transform_indices = @transform_0, window_bounds = array<i64: 1024, 128>}, {transform_indices = @transform_1, window_bounds = array<i64: 8, 128>}, {transform_indices = @transform_2, window_bounds = array<i64: 8, 128>}]} {
    %c0_i32 = arith.constant 0 : i32
    %0 = arith.cmpi eq, %arg1, %c0_i32 : i32
    %1 = arith.extui %0 : i1 to i32
    %c0_i32_0 = arith.constant 0 : i32
    %2 = arith.cmpi ne, %1, %c0_i32_0 : i32
    scf.if %2 {
      %cst = arith.constant 0.000000e+00 : f32
      %13 = vector.broadcast %cst : f32 to vector<8x128xf32>
      %c0 = arith.constant 0 : index
      %c0_5 = arith.constant 0 : index
      %14 = vector.load %arg3[%c0, %c0_5] : memref<8x128xf32, #tpu.memory_space<vmem>>, vector<8x128xf32>
      tpu.vector_store %arg3[%c0, %c0_5], %13 {strides = array<i32>} : memref<8x128xf32, #tpu.memory_space<vmem>>, vector<8x128xf32>,
      %cst_6 = arith.constant 0.000000e+00 : f32
      %15 = vector.broadcast %cst_6 : f32 to vector<8x128xf32>
      %c0_7 = arith.constant 0 : index
      %c0_8 = arith.constant 0 : index
      %16 = vector.load %arg4[%c0_7, %c0_8] : memref<8x128xf32, #tpu.memory_space<vmem>>, vector<8x128xf32>
      tpu.vector_store %arg4[%c0_7, %c0_8], %15 {strides = array<i32>} : memref<8x128xf32, #tpu.memory_space<vmem>>, vector<8x128xf32>,
    } else {
    }
    %c1_i32 = arith.constant 1 : i32
    %3 = arith.muli %arg0, %c1_i32 : i32
    %4 = arith.addi %3, %arg1 : i32
    %c1024_i32 = arith.constant 1024 : i32
    %5 = arith.muli %4, %c1024_i32 : i32
    %c1024_i32_1 = arith.constant 1024 : i32
    %6 = arith.addi %5, %c1024_i32_1 : i32
    %c1024_i32_2 = arith.constant 1024 : i32
    %7 = arith.cmpi sle, %6, %c1024_i32_2 : i32
    %8 = arith.extui %7 : i1 to i32
    %c0_i32_3 = arith.constant 0 : i32
    %9 = arith.cmpi ne, %8, %c0_i32_3 : i32
    scf.if %9 {
      %cst = arith.constant 0.000000e+00 : f32
      %13 = vector.broadcast %cst : f32 to vector<8x128xf32>
      %c0_i32_5 = arith.constant 0 : i32
      %c256_i32 = arith.constant 256 : i32
      %14 = arith.muli %c0_i32_5, %c256_i32 : i32
      %15 = tpu.assume_multiple %14, 256 : i32
      %16 = arith.index_cast %15 : i32 to index
      %c0 = arith.constant 0 : index
      %17 = vector.load %arg2[%16, %c0] : memref<1024x128xf32, #tpu.memory_space<vmem>>, vector<256x128xf32>
      %18 = vector.shape_cast %17 : vector<256x128xf32> to vector<32x8x128xf32>
      %cst_6 = arith.constant dense<0.000000e+00> : vector<8x128xf32>
      %19 = vector.multi_reduction <add>, %18, %cst_6 [0] : vector<32x8x128xf32> to vector<8x128xf32>
      %20 = arith.addf %13, %19 : vector<8x128xf32>
      %21 = arith.mulf %18, %18 : vector<32x8x128xf32>
      %cst_7 = arith.constant dense<0.000000e+00> : vector<8x128xf32>
      %22 = vector.multi_reduction <add>, %21, %cst_7 [0] : vector<32x8x128xf32> to vector<8x128xf32>
      %23 = arith.addf %13, %22 : vector<8x128xf32>
      %c1_i32_8 = arith.constant 1 : i32
      %c256_i32_9 = arith.constant 256 : i32
      %24 = arith.muli %c1_i32_8, %c256_i32_9 : i32
      %25 = tpu.assume_multiple %24, 256 : i32
      %26 = arith.index_cast %25 : i32 to index
      %c0_10 = arith.constant 0 : index
      %27 = vector.load %arg2[%26, %c0_10] : memref<1024x128xf32, #tpu.memory_space<vmem>>, vector<256x128xf32>
      %28 = vector.shape_cast %27 : vector<256x128xf32> to vector<32x8x128xf32>
      %cst_11 = arith.constant dense<0.000000e+00> : vector<8x128xf32>
      %29 = vector.multi_reduction <add>, %28, %cst_11 [0] : vector<32x8x128xf32> to vector<8x128xf32>
      %30 = arith.addf %20, %29 : vector<8x128xf32>
      %31 = arith.mulf %28, %28 : vector<32x8x128xf32>
      %cst_12 = arith.constant dense<0.000000e+00> : vector<8x128xf32>
      %32 = vector.multi_reduction <add>, %31, %cst_12 [0] : vector<32x8x128xf32> to vector<8x128xf32>
      %33 = arith.addf %23, %32 : vector<8x128xf32>
      %c2_i32 = arith.constant 2 : i32
      %c256_i32_13 = arith.constant 256 : i32
      %34 = arith.muli %c2_i32, %c256_i32_13 : i32
      %35 = tpu.assume_multiple %34, 256 : i32
      %36 = arith.index_cast %35 : i32 to index
      %c0_14 = arith.constant 0 : index
      %37 = vector.load %arg2[%36, %c0_14] : memref<1024x128xf32, #tpu.memory_space<vmem>>, vector<256x128xf32>
      %38 = vector.shape_cast %37 : vector<256x128xf32> to vector<32x8x128xf32>
      %cst_15 = arith.constant dense<0.000000e+00> : vector<8x128xf32>
      %39 = vector.multi_reduction <add>, %38, %cst_15 [0] : vector<32x8x128xf32> to vector<8x128xf32>
      %40 = arith.addf %30, %39 : vector<8x128xf32>
      %41 = arith.mulf %38, %38 : vector<32x8x128xf32>
      %cst_16 = arith.constant dense<0.000000e+00> : vector<8x128xf32>
      %42 = vector.multi_reduction <add>, %41, %cst_16 [0] : vector<32x8x128xf32> to vector<8x128xf32>
      %43 = arith.addf %33, %42 : vector<8x128xf32>
      %c3_i32 = arith.constant 3 : i32
      %c256_i32_17 = arith.constant 256 : i32
      %44 = arith.muli %c3_i32, %c256_i32_17 : i32
      %45 = tpu.assume_multiple %44, 256 : i32
      %46 = arith.index_cast %45 : i32 to index
      %c0_18 = arith.constant 0 : index
      %47 = vector.load %arg2[%46, %c0_18] : memref<1024x128xf32, #tpu.memory_space<vmem>>, vector<256x128xf32>
      %48 = vector.shape_cast %47 : vector<256x128xf32> to vector<32x8x128xf32>
      %cst_19 = arith.constant dense<0.000000e+00> : vector<8x128xf32>
      %49 = vector.multi_reduction <add>, %48, %cst_19 [0] : vector<32x8x128xf32> to vector<8x128xf32>
      %50 = arith.addf %40, %49 : vector<8x128xf32>
      %51 = arith.mulf %48, %48 : vector<32x8x128xf32>
      %cst_20 = arith.constant dense<0.000000e+00> : vector<8x128xf32>
      %52 = vector.multi_reduction <add>, %51, %cst_20 [0] : vector<32x8x128xf32> to vector<8x128xf32>
      %53 = arith.addf %43, %52 : vector<8x128xf32>
      %c4_i32 = arith.constant 4 : i32
      %c0_21 = arith.constant 0 : index
      %c0_22 = arith.constant 0 : index
      %54 = vector.load %arg3[%c0_21, %c0_22] : memref<8x128xf32, #tpu.memory_space<vmem>>, vector<8x128xf32>
      %55 = arith.addf %54, %50 : vector<8x128xf32>
      %c0_23 = arith.constant 0 : index
      %c0_24 = arith.constant 0 : index
      %56 = vector.load %arg3[%c0_23, %c0_24] : memref<8x128xf32, #tpu.memory_space<vmem>>, vector<8x128xf32>
      tpu.vector_store %arg3[%c0_23, %c0_24], %55 {strides = array<i32>} : memref<8x128xf32, #tpu.memory_space<vmem>>, vector<8x128xf32>,
      %c0_25 = arith.constant 0 : index
      %c0_26 = arith.constant 0 : index
      %57 = vector.load %arg4[%c0_25, %c0_26] : memref<8x128xf32, #tpu.memory_space<vmem>>, vector<8x128xf32>
      %58 = arith.addf %57, %53 : vector<8x128xf32>
      %c0_27 = arith.constant 0 : index
      %c0_28 = arith.constant 0 : index
      %59 = vector.load %arg4[%c0_27, %c0_28] : memref<8x128xf32, #tpu.memory_space<vmem>>, vector<8x128xf32>
      tpu.vector_store %arg4[%c0_27, %c0_28], %58 {strides = array<i32>} : memref<8x128xf32, #tpu.memory_space<vmem>>, vector<8x128xf32>,
    } else {
    }
    %true = arith.constant true
    %10 = arith.xori %7, %true : i1
    %11 = arith.extui %10 : i1 to i32
    %c0_i32_4 = arith.constant 0 : i32
    %12 = arith.cmpi ne, %11, %c0_i32_4 : i32
    scf.if %12 {
      %cst = arith.constant 0.000000e+00 : f32
      %13 = vector.broadcast %cst : f32 to vector<8x128xf32>
      %c0_i32_5 = arith.constant 0 : i32
      %c256_i32 = arith.constant 256 : i32
      %14 = arith.muli %c0_i32_5, %c256_i32 : i32
      %15 = tpu.assume_multiple %14, 256 : i32
      %16 = arith.index_cast %15 : i32 to index
      %c0 = arith.constant 0 : index
      %17 = vector.load %arg2[%16, %c0] : memref<1024x128xf32, #tpu.memory_space<vmem>>, vector<256x128xf32>
      %18 = arith.addi %5, %15 : i32
      %19 = tpu.iota {dimensions = array<i32: 0>} : vector<256x128xi32>
      %20 = vector.broadcast %18 : i32 to vector<256x128xi32>
      %21 = arith.addi %20, %19 : vector<256x128xi32>
      %c1024_i32_6 = arith.constant 1024 : i32
      %22 = vector.broadcast %c1024_i32_6 : i32 to vector<256x128xi32>
      %23 = arith.cmpi slt, %21, %22 : vector<256x128xi32>
      %cst_7 = arith.constant 0.000000e+00 : f32
      %24 = vector.broadcast %cst_7 : f32 to vector<256x128xf32>
      %25 = arith.select %23, %17, %24 : vector<256x128xi1>, vector<256x128xf32>
      %26 = vector.shape_cast %25 : vector<256x128xf32> to vector<32x8x128xf32>
      %cst_8 = arith.constant dense<0.000000e+00> : vector<8x128xf32>
      %27 = vector.multi_reduction <add>, %26, %cst_8 [0] : vector<32x8x128xf32> to vector<8x128xf32>
      %28 = arith.addf %13, %27 : vector<8x128xf32>
      %29 = arith.mulf %26, %26 : vector<32x8x128xf32>
      %cst_9 = arith.constant dense<0.000000e+00> : vector<8x128xf32>
      %30 = vector.multi_reduction <add>, %29, %cst_9 [0] : vector<32x8x128xf32> to vector<8x128xf32>
      %31 = arith.addf %13, %30 : vector<8x128xf32>
      %c1_i32_10 = arith.constant 1 : i32
      %c256_i32_11 = arith.constant 256 : i32
      %32 = arith.muli %c1_i32_10, %c256_i32_11 : i32
      %33 = tpu.assume_multiple %32, 256 : i32
      %34 = arith.index_cast %33 : i32 to index
      %c0_12 = arith.constant 0 : index
      %35 = vector.load %arg2[%34, %c0_12] : memref<1024x128xf32, #tpu.memory_space<vmem>>, vector<256x128xf32>
      %36 = arith.addi %5, %33 : i32
      %37 = tpu.iota {dimensions = array<i32: 0>} : vector<256x128xi32>
      %38 = vector.broadcast %36 : i32 to vector<256x128xi32>
      %39 = arith.addi %38, %37 : vector<256x128xi32>
      %c1024_i32_13 = arith.constant 1024 : i32
      %40 = vector.broadcast %c1024_i32_13 : i32 to vector<256x128xi32>
      %41 = arith.cmpi slt, %39, %40 : vector<256x128xi32>
      %cst_14 = arith.constant 0.000000e+00 : f32
      %42 = vector.broadcast %cst_14 : f32 to vector<256x128xf32>
      %43 = arith.select %41, %35, %42 : vector<256x128xi1>, vector<256x128xf32>
      %44 = vector.shape_cast %43 : vector<256x128xf32> to vector<32x8x128xf32>
      %cst_15 = arith.constant dense<0.000000e+00> : vector<8x128xf32>
      %45 = vector.multi_reduction <add>, %44, %cst_15 [0] : vector<32x8x128xf32> to vector<8x128xf32>
      %46 = arith.addf %28, %45 : vector<8x128xf32>
      %47 = arith.mulf %44, %44 : vector<32x8x128xf32>
      %cst_16 = arith.constant dense<0.000000e+00> : vector<8x128xf32>
      %48 = vector.multi_reduction <add>, %47, %cst_16 [0] : vector<32x8x128xf32> to vector<8x128xf32>
      %49 = arith.addf %31, %48 : vector<8x128xf32>
      %c2_i32 = arith.constant 2 : i32
      %c256_i32_17 = arith.constant 256 : i32
      %50 = arith.muli %c2_i32, %c256_i32_17 : i32
      %51 = tpu.assume_multiple %50, 256 : i32
      %52 = arith.index_cast %51 : i32 to index
      %c0_18 = arith.constant 0 : index
      %53 = vector.load %arg2[%52, %c0_18] : memref<1024x128xf32, #tpu.memory_space<vmem>>, vector<256x128xf32>
      %54 = arith.addi %5, %51 : i32
      %55 = tpu.iota {dimensions = array<i32: 0>} : vector<256x128xi32>
      %56 = vector.broadcast %54 : i32 to vector<256x128xi32>
      %57 = arith.addi %56, %55 : vector<256x128xi32>
      %c1024_i32_19 = arith.constant 1024 : i32
      %58 = vector.broadcast %c1024_i32_19 : i32 to vector<256x128xi32>
      %59 = arith.cmpi slt, %57, %58 : vector<256x128xi32>
      %cst_20 = arith.constant 0.000000e+00 : f32
      %60 = vector.broadcast %cst_20 : f32 to vector<256x128xf32>
      %61 = arith.select %59, %53, %60 : vector<256x128xi1>, vector<256x128xf32>
      %62 = vector.shape_cast %61 : vector<256x128xf32> to vector<32x8x128xf32>
      %cst_21 = arith.constant dense<0.000000e+00> : vector<8x128xf32>
      %63 = vector.multi_reduction <add>, %62, %cst_21 [0] : vector<32x8x128xf32> to vector<8x128xf32>
      %64 = arith.addf %46, %63 : vector<8x128xf32>
      %65 = arith.mulf %62, %62 : vector<32x8x128xf32>
      %cst_22 = arith.constant dense<0.000000e+00> : vector<8x128xf32>
      %66 = vector.multi_reduction <add>, %65, %cst_22 [0] : vector<32x8x128xf32> to vector<8x128xf32>
      %67 = arith.addf %49, %66 : vector<8x128xf32>
      %c3_i32 = arith.constant 3 : i32
      %c256_i32_23 = arith.constant 256 : i32
      %68 = arith.muli %c3_i32, %c256_i32_23 : i32
      %69 = tpu.assume_multiple %68, 256 : i32
      %70 = arith.index_cast %69 : i32 to index
      %c0_24 = arith.constant 0 : index
      %71 = vector.load %arg2[%70, %c0_24] : memref<1024x128xf32, #tpu.memory_space<vmem>>, vector<256x128xf32>
      %72 = arith.addi %5, %69 : i32
      %73 = tpu.iota {dimensions = array<i32: 0>} : vector<256x128xi32>
      %74 = vector.broadcast %72 : i32 to vector<256x128xi32>
      %75 = arith.addi %74, %73 : vector<256x128xi32>
      %c1024_i32_25 = arith.constant 1024 : i32
      %76 = vector.broadcast %c1024_i32_25 : i32 to vector<256x128xi32>
      %77 = arith.cmpi slt, %75, %76 : vector<256x128xi32>
      %cst_26 = arith.constant 0.000000e+00 : f32
      %78 = vector.broadcast %cst_26 : f32 to vector<256x128xf32>
      %79 = arith.select %77, %71, %78 : vector<256x128xi1>, vector<256x128xf32>
      %80 = vector.shape_cast %79 : vector<256x128xf32> to vector<32x8x128xf32>
      %cst_27 = arith.constant dense<0.000000e+00> : vector<8x128xf32>
      %81 = vector.multi_reduction <add>, %80, %cst_27 [0] : vector<32x8x128xf32> to vector<8x128xf32>
      %82 = arith.addf %64, %81 : vector<8x128xf32>
      %83 = arith.mulf %80, %80 : vector<32x8x128xf32>
      %cst_28 = arith.constant dense<0.000000e+00> : vector<8x128xf32>
      %84 = vector.multi_reduction <add>, %83, %cst_28 [0] : vector<32x8x128xf32> to vector<8x128xf32>
      %85 = arith.addf %67, %84 : vector<8x128xf32>
      %c4_i32 = arith.constant 4 : i32
      %c0_29 = arith.constant 0 : index
      %c0_30 = arith.constant 0 : index
      %86 = vector.load %arg3[%c0_29, %c0_30] : memref<8x128xf32, #tpu.memory_space<vmem>>, vector<8x128xf32>
      %87 = arith.addf %86, %82 : vector<8x128xf32>
      %c0_31 = arith.constant 0 : index
      %c0_32 = arith.constant 0 : index
      %88 = vector.load %arg3[%c0_31, %c0_32] : memref<8x128xf32, #tpu.memory_space<vmem>>, vector<8x128xf32>
      tpu.vector_store %arg3[%c0_31, %c0_32], %87 {strides = array<i32>} : memref<8x128xf32, #tpu.memory_space<vmem>>, vector<8x128xf32>,
      %c0_33 = arith.constant 0 : index
      %c0_34 = arith.constant 0 : index
      %89 = vector.load %arg4[%c0_33, %c0_34] : memref<8x128xf32, #tpu.memory_space<vmem>>, vector<8x128xf32>
      %90 = arith.addf %89, %85 : vector<8x128xf32>
      %c0_35 = arith.constant 0 : index
      %c0_36 = arith.constant 0 : index
      %91 = vector.load %arg4[%c0_35, %c0_36] : memref<8x128xf32, #tpu.memory_space<vmem>>, vector<8x128xf32>
      tpu.vector_store %arg4[%c0_35, %c0_36], %90 {strides = array<i32>} : memref<8x128xf32, #tpu.memory_space<vmem>>, vector<8x128xf32>,
    } else {
    }
    return
  }
  func.func @transform_0(%arg0: i32, %arg1: i32) -> (i32, i32) {
    %c1_i32 = arith.constant 1 : i32
    %0 = arith.muli %arg0, %c1_i32 : i32
    %1 = arith.addi %0, %arg1 : i32
    %c0_i32 = arith.constant 0 : i32
    %2 = arith.minsi %1, %c0_i32 : i32
    %c0_i32_0 = arith.constant 0 : i32
    %c0_i32_1 = arith.constant 0 : i32
    return %2, %c0_i32_0 : i32, i32
  }
  func.func @transform_1(%arg0: i32, %arg1: i32) -> (i32, i32) {
    %c0_i32 = arith.constant 0 : i32
    %c0_i32_0 = arith.constant 0 : i32
    return %arg0, %c0_i32 : i32, i32
  }
  func.func @transform_2(%arg0: i32, %arg1: i32) -> (i32, i32) {
    %c0_i32 = arith.constant 0 : i32
    %c0_i32_0 = arith.constant 0 : i32
    return %arg0, %c0_i32 : i32, i32
  }
}

</mosaic_0001>

<llo_original>
// kernel: tpu_custom_call.1
$region0: #{tpu_custom_call.1}
  #allocation0 [shape = 'u32[]', space=smem, size = 0x4, offset = 0x4, fixed_abs, tag = 'smem constant byte address 0x4 - core index']
  #allocation1 [shape = 'u32[144,128]{1,0:T(1,128)}', space=vmem, size = 0x12000, scoped, tag = 'internal scratch']
  %s0 = inlined_call_operand.hbm [shape: f32[1024,128], index: 0, kind: input, shape index: {}]
  %s1 = inlined_call_operand.hbm [shape: f32[8,128], index: 1, kind: output, shape index: {0}]
  %s2 = inlined_call_operand.hbm [shape: f32[8,128], index: 2, kind: output, shape index: {1}]
  %3 = xla_tuple %s1, %s2
  %s4 = sld [smem:[#allocation0]]
  $region38: #{tpu_custom_call.1} parent=0
    _
  %s6 = ssub.s32 1, %s4
  %s7 = scalar_select 0, %s6, %s4
  $region1: #{tpu_custom_call.1} parent=0
    #allocation2 [shape = 'u8[524288]{0}', space=vmem, size = 0x80000, scoped, tag = 'input window, operand 0, single buffered']
    #allocation3 [shape = 's32[1]{0}', space=sflag, size = 0x4, scoped, tag = 'scoped memory for tpu_custom_call.1']
    #allocation4 [shape = 's32[1]{0}', space=sflag, size = 0x4, scoped, tag = 'scoped memory for tpu_custom_call.1']
    #allocation5 [shape = 'u8[4096]{0}', space=vmem, size = 0x1000, scoped, tag = 'output window, operand 0, single buffered']
    #allocation6 [shape = 'u8[4096]{0}', space=vmem, size = 0x1000, scoped, tag = 'output window, operand 1, single buffered']
    #allocation7 [shape = 's32[1]{0}', space=sflag, size = 0x4, scoped, tag = 'scoped memory for tpu_custom_call.1']
    %8 = vsyncpa [#allocation3], 0
    %9 = vsyncpa [#allocation4], 0
    %10 = vsyncpa [#allocation7], 0
    // Predicated region
    $region2: #{tpu_custom_call.1} parent=1 // pred_check
      _
    $region3: #{tpu_custom_call.1} parent=1 // pred_check_branch
      %12 = sbr.rel (0) target = $region5
    $region4: #{tpu_custom_call.1} parent=1 // pred_region
      %s13 = sadd.s32 0, 0
      %p14 = scmp.lt.s32.totalorder %s13, 0
      %s15 = scalar_select %p14, %s13, 0
      %s16 = smul.u32 128, %s15
      %s18 = ssub.s32 16384, 16384
      %19 = vsyncadd [#allocation3], %s18
      %s20 = smul.addr %s16, 128
      %s21 = scalar_lea.hbm %s0, %s20
      %s22 = sshll.u32 [#allocation2], 4
      %s23 = int_to_ptr.vmem [resolvable:$true] %s22
      %28 = dma.hbm_to_vmem [thread:$0]  %s21, 16384, %s23, [#allocation3], 128, 128, 8
    $region5: #{tpu_custom_call.1} parent=1 // pred_fallthru
      _
    // Predicated region
    $region6: #{tpu_custom_call.1} parent=1 // pred_check
      _
    $region7: #{tpu_custom_call.1} parent=1 // pred_check_branch
      %30 = sbr.rel (0) target = $region9
    $region8: #{tpu_custom_call.1} parent=1 // pred_region
      %31 = dma.done [#allocation3], 16384
    $region9: #{tpu_custom_call.1} parent=1 // pred_fallthru
      _
    %s32 = sadd.s32 0, 0
    %p33 = scmp.lt.s32.totalorder %s32, 0
    %s34 = scalar_select %p33, %s32, 0
    %s35 = smul.u32 128, %s34
    %p36 = scmp.eq.s32.totalorder 0, 0
    // Predicated region
    $region10: #{tpu_custom_call.1} parent=1 // pred_check
      %p37 = pneg %p36
    $region11: #{tpu_custom_call.1} parent=1 // pred_check_branch
      %39 = sbr.rel (%p37) target = $region13
    $region12: #{tpu_custom_call.1} parent=1 // pred_region
      %40 = vst [vmem:[#allocation5] sm:$0xff] 0.0
      %41 = vst [vmem:[#allocation6] sm:$0xff] 0.0
    $region13: #{tpu_custom_call.1} parent=1 // pred_fallthru
      _
    %s42 = sadd.s32 0, 0
    %s43 = smul.u32 %s42, 1024
    %s44 = sadd.s32 %s43, 1024
    %p45 = scmp.le.s32.totalorder %s44, 1024
    // Predicated region
    $region14: #{tpu_custom_call.1} parent=1 // pred_check
      %p46 = pneg %p45
    $region15: #{tpu_custom_call.1} parent=1 // pred_check_branch
      %48 = sbr.rel (%p46) target = $region17
    $region16: #{tpu_custom_call.1} parent=1 // pred_region
      %v49 = vld [vmem:[#allocation2] sm:$0xff]
      %v50 = vld [vmem:[#allocation2 + $0x8] sm:$0xff]
      %v51 = vld [vmem:[#allocation2 + $0x10] sm:$0xff]
      %v52 = vld [vmem:[#allocation2 + $0x18] sm:$0xff]
      %v53 = vld [vmem:[#allocation2 + $0x20] sm:$0xff]
      %v54 = vld [vmem:[#allocation2 + $0x28] sm:$0xff]
      %v55 = vld [vmem:[#allocation2 + $0x30] sm:$0xff]
      %v56 = vld [vmem:[#allocation2 + $0x38] sm:$0xff]
      %v57 = vld [vmem:[#allocation2 + $0x40] sm:$0xff]
      %v58 = vld [vmem:[#allocation2 + $0x48] sm:$0xff]
      %v59 = vld [vmem:[#allocation2 + $0x50] sm:$0xff]
      %v60 = vld [vmem:[#allocation2 + $0x58] sm:$0xff]
      %v61 = vld [vmem:[#allocation2 + $0x60] sm:$0xff]
      %v62 = vld [vmem:[#allocation2 + $0x68] sm:$0xff]
      %v63 = vld [vmem:[#allocation2 + $0x70] sm:$0xff]
      %v64 = vld [vmem:[#allocation2 + $0x78] sm:$0xff]
      %v65 = vld [vmem:[#allocation2 + $0x80] sm:$0xff]
      %v66 = vld [vmem:[#allocation2 + $0x88] sm:$0xff]
      %v67 = vld [vmem:[#allocation2 + $0x90] sm:$0xff]
      %v68 = vld [vmem:[#allocation2 + $0x98] sm:$0xff]
      %v69 = vld [vmem:[#allocation2 + $0xa0] sm:$0xff]
      %v70 = vld [vmem:[#allocation2 + $0xa8] sm:$0xff]
      %v71 = vld [vmem:[#allocation2 + $0xb0] sm:$0xff]
      %v72 = vld [vmem:[#allocation2 + $0xb8] sm:$0xff]
      %v73 = vld [vmem:[#allocation2 + $0xc0] sm:$0xff]
      %v74 = vld [vmem:[#allocation2 + $0xc8] sm:$0xff]
      %v75 = vld [vmem:[#allocation2 + $0xd0] sm:$0xff]
      %v76 = vld [vmem:[#allocation2 + $0xd8] sm:$0xff]
      %v77 = vld [vmem:[#allocation2 + $0xe0] sm:$0xff]
      %v78 = vld [vmem:[#allocation2 + $0xe8] sm:$0xff]
      %v79 = vld [vmem:[#allocation2 + $0xf0] sm:$0xff]
      %v80 = vld [vmem:[#allocation2 + $0xf8] sm:$0xff]
      %v81 = vadd.f32 %v49, %v50
      %v82 = vadd.f32 %v81, %v51
      %v83 = vadd.f32 %v82, %v52
      %v84 = vadd.f32 %v83, %v53
      %v85 = vadd.f32 %v84, %v54
      %v86 = vadd.f32 %v85, %v55
      %v87 = vadd.f32 %v86, %v56
      %v88 = vadd.f32 %v87, %v57
      %v89 = vadd.f32 %v88, %v58
      %v90 = vadd.f32 %v89, %v59
      %v91 = vadd.f32 %v90, %v60
      %v92 = vadd.f32 %v91, %v61
      %v93 = vadd.f32 %v92, %v62
      %v94 = vadd.f32 %v93, %v63
      %v95 = vadd.f32 %v94, %v64
      %v96 = vadd.f32 %v95, %v65
      %v97 = vadd.f32 %v96, %v66
      %v98 = vadd.f32 %v97, %v67
      %v99 = vadd.f32 %v98, %v68
      %v100 = vadd.f32 %v99, %v69
      %v101 = vadd.f32 %v100, %v70
      %v102 = vadd.f32 %v101, %v71
      %v103 = vadd.f32 %v102, %v72
      %v104 = vadd.f32 %v103, %v73
      %v105 = vadd.f32 %v104, %v74
      %v106 = vadd.f32 %v105, %v75
      %v107 = vadd.f32 %v106, %v76
      %v108 = vadd.f32 %v107, %v77
      %v109 = vadd.f32 %v108, %v78
      %v110 = vadd.f32 %v109, %v79
      %v111 = vadd.f32 %v110, %v80
      %v112 = vadd.f32 %v111, 0.0
      %v113 = vmul.f32 %v49, %v49
      %v114 = vmul.f32 %v50, %v50
      %v115 = vmul.f32 %v51, %v51
      %v116 = vmul.f32 %v52, %v52
      %v117 = vmul.f32 %v53, %v53
      %v118 = vmul.f32 %v54, %v54
      %v119 = vmul.f32 %v55, %v55
      %v120 = vmul.f32 %v56, %v56
      %v121 = vmul.f32 %v57, %v57
      %v122 = vmul.f32 %v58, %v58
      %v123 = vmul.f32 %v59, %v59
      %v124 = vmul.f32 %v60, %v60
      %v125 = vmul.f32 %v61, %v61
      %v126 = vmul.f32 %v62, %v62
      %v127 = vmul.f32 %v63, %v63
      %v128 = vmul.f32 %v64, %v64
      %v129 = vmul.f32 %v65, %v65
      %v130 = vmul.f32 %v66, %v66
      %v131 = vmul.f32 %v67, %v67
      %v132 = vmul.f32 %v68, %v68
      %v133 = vmul.f32 %v69, %v69
      %v134 = vmul.f32 %v70, %v70
      %v135 = vmul.f32 %v71, %v71
      %v136 = vmul.f32 %v72, %v72
      %v137 = vmul.f32 %v73, %v73
      %v138 = vmul.f32 %v74, %v74
      %v139 = vmul.f32 %v75, %v75
      %v140 = vmul.f32 %v76, %v76
      %v141 = vmul.f32 %v77, %v77
      %v142 = vmul.f32 %v78, %v78
      %v143 = vmul.f32 %v79, %v79
      %v144 = vmul.f32 %v80, %v80
      %v145 = vadd.f32 %v113, %v114
      %v146 = vadd.f32 %v145, %v115
      %v147 = vadd.f32 %v146, %v116
      %v148 = vadd.f32 %v147, %v117
      %v149 = vadd.f32 %v148, %v118
      %v150 = vadd.f32 %v149, %v119
      %v151 = vadd.f32 %v150, %v120
      %v152 = vadd.f32 %v151, %v121
      %v153 = vadd.f32 %v152, %v122
      %v154 = vadd.f32 %v153, %v123
      %v155 = vadd.f32 %v154, %v124
      %v156 = vadd.f32 %v155, %v125
      %v157 = vadd.f32 %v156, %v126
      %v158 = vadd.f32 %v157, %v127
      %v159 = vadd.f32 %v158, %v128
      %v160 = vadd.f32 %v159, %v129
      %v161 = vadd.f32 %v160, %v130
      %v162 = vadd.f32 %v161, %v131
      %v163 = vadd.f32 %v162, %v132
      %v164 = vadd.f32 %v163, %v133
      %v165 = vadd.f32 %v164, %v134
      %v166 = vadd.f32 %v165, %v135
      %v167 = vadd.f32 %v166, %v136
      %v168 = vadd.f32 %v167, %v137
      %v169 = vadd.f32 %v168, %v138
      %v170 = vadd.f32 %v169, %v139
      %v171 = vadd.f32 %v170, %v140
      %v172 = vadd.f32 %v171, %v141
      %v173 = vadd.f32 %v172, %v142
      %v174 = vadd.f32 %v173, %v143
      %v175 = vadd.f32 %v174, %v144
      %v176 = vadd.f32 %v175, 0.0
      %s177 = scalar_lea.vmem [#allocation2], 256
      %v178 = vld [vmem:[%s177] sm:$0xff]
      %v179 = vld [vmem:[%s177 + $0x8] sm:$0xff]
      %v180 = vld [vmem:[%s177 + $0x10] sm:$0xff]
      %v181 = vld [vmem:[%s177 + $0x18] sm:$0xff]
      %v182 = vld [vmem:[%s177 + $0x20] sm:$0xff]
      %v183 = vld [vmem:[%s177 + $0x28] sm:$0xff]
      %v184 = vld [vmem:[%s177 + $0x30] sm:$0xff]
      %v185 = vld [vmem:[%s177 + $0x38] sm:$0xff]
      %v186 = vld [vmem:[%s177 + $0x40] sm:$0xff]
      %v187 = vld [vmem:[%s177 + $0x48] sm:$0xff]
      %v188 = vld [vmem:[%s177 + $0x50] sm:$0xff]
      %v189 = vld [vmem:[%s177 + $0x58] sm:$0xff]
      %v190 = vld [vmem:[%s177 + $0x60] sm:$0xff]
      %v191 = vld [vmem:[%s177 + $0x68] sm:$0xff]
      %v192 = vld [vmem:[%s177 + $0x70] sm:$0xff]
      %v193 = vld [vmem:[%s177 + $0x78] sm:$0xff]
      %v194 = vld [vmem:[%s177 + $0x80] sm:$0xff]
      %v195 = vld [vmem:[%s177 + $0x88] sm:$0xff]
      %v196 = vld [vmem:[%s177 + $0x90] sm:$0xff]
      %v197 = vld [vmem:[%s177 + $0x98] sm:$0xff]
      %v198 = vld [vmem:[%s177 + $0xa0] sm:$0xff]
      %v199 = vld [vmem:[%s177 + $0xa8] sm:$0xff]
      %v200 = vld [vmem:[%s177 + $0xb0] sm:$0xff]
      %v201 = vld [vmem:[%s177 + $0xb8] sm:$0xff]
      %v202 = vld [vmem:[%s177 + $0xc0] sm:$0xff]
      %v203 = vld [vmem:[%s177 + $0xc8] sm:$0xff]
      %v204 = vld [vmem:[%s177 + $0xd0] sm:$0xff]
      %v205 = vld [vmem:[%s177 + $0xd8] sm:$0xff]
      %v206 = vld [vmem:[%s177 + $0xe0] sm:$0xff]
      %v207 = vld [vmem:[%s177 + $0xe8] sm:$0xff]
      %v208 = vld [vmem:[%s177 + $0xf0] sm:$0xff]
      %v209 = vld [vmem:[%s177 + $0xf8] sm:$0xff]
      %v210 = vadd.f32 %v178, %v179
      %v211 = vadd.f32 %v210, %v180
      %v212 = vadd.f32 %v211, %v181
      %v213 = vadd.f32 %v212, %v182
      %v214 = vadd.f32 %v213, %v183
      %v215 = vadd.f32 %v214, %v184
      %v216 = vadd.f32 %v215, %v185
      %v217 = vadd.f32 %v216, %v186
      %v218 = vadd.f32 %v217, %v187
      %v219 = vadd.f32 %v218, %v188
      %v220 = vadd.f32 %v219, %v189
      %v221 = vadd.f32 %v220, %v190
      %v222 = vadd.f32 %v221, %v191
      %v223 = vadd.f32 %v222, %v192
      %v224 = vadd.f32 %v223, %v193
      %v225 = vadd.f32 %v224, %v194
      %v226 = vadd.f32 %v225, %v195
      %v227 = vadd.f32 %v226, %v196
      %v228 = vadd.f32 %v227, %v197
      %v229 = vadd.f32 %v228, %v198
      %v230 = vadd.f32 %v229, %v199
      %v231 = vadd.f32 %v230, %v200
      %v232 = vadd.f32 %v231, %v201
      %v233 = vadd.f32 %v232, %v202
      %v234 = vadd.f32 %v233, %v203
      %v235 = vadd.f32 %v234, %v204
      %v236 = vadd.f32 %v235, %v205
      %v237 = vadd.f32 %v236, %v206
      %v238 = vadd.f32 %v237, %v207
      %v239 = vadd.f32 %v238, %v208
      %v240 = vadd.f32 %v239, %v209
      %v241 = vadd.f32 %v112, %v240
      %v242 = vmul.f32 %v178, %v178
      %v243 = vmul.f32 %v179, %v179
      %v244 = vmul.f32 %v180, %v180
      %v245 = vmul.f32 %v181, %v181
      %v246 = vmul.f32 %v182, %v182
      %v247 = vmul.f32 %v183, %v183
      %v248 = vmul.f32 %v184, %v184
      %v249 = vmul.f32 %v185, %v185
      %v250 = vmul.f32 %v186, %v186
      %v251 = vmul.f32 %v187, %v187
      %v252 = vmul.f32 %v188, %v188
      %v253 = vmul.f32 %v189, %v189
      %v254 = vmul.f32 %v190, %v190
      %v255 = vmul.f32 %v191, %v191
      %v256 = vmul.f32 %v192, %v192
      %v257 = vmul.f32 %v193, %v193
      %v258 = vmul.f32 %v194, %v194
      %v259 = vmul.f32 %v195, %v195
      %v260 = vmul.f32 %v196, %v196
      %v261 = vmul.f32 %v197, %v197
      %v262 = vmul.f32 %v198, %v198
      %v263 = vmul.f32 %v199, %v199
      %v264 = vmul.f32 %v200, %v200
      %v265 = vmul.f32 %v201, %v201
      %v266 = vmul.f32 %v202, %v202
      %v267 = vmul.f32 %v203, %v203
      %v268 = vmul.f32 %v204, %v204
      %v269 = vmul.f32 %v205, %v205
      %v270 = vmul.f32 %v206, %v206
      %v271 = vmul.f32 %v207, %v207
      %v272 = vmul.f32 %v208, %v208
      %v273 = vmul.f32 %v209, %v209
      %v274 = vadd.f32 %v242, %v243
      %v275 = vadd.f32 %v274, %v244
      %v276 = vadd.f32 %v275, %v245
      %v277 = vadd.f32 %v276, %v246
      %v278 = vadd.f32 %v277, %v247
      %v279 = vadd.f32 %v278, %v248
      %v280 = vadd.f32 %v279, %v249
      %v281 = vadd.f32 %v280, %v250
      %v282 = vadd.f32 %v281, %v251
      %v283 = vadd.f32 %v282, %v252
      %v284 = vadd.f32 %v283, %v253
      %v285 = vadd.f32 %v284, %v254
      %v286 = vadd.f32 %v285, %v255
      %v287 = vadd.f32 %v286, %v256
      %v288 = vadd.f32 %v287, %v257
      %v289 = vadd.f32 %v288, %v258
      %v290 = vadd.f32 %v289, %v259
      %v291 = vadd.f32 %v290, %v260
      %v292 = vadd.f32 %v291, %v261
      %v293 = vadd.f32 %v292, %v262
      %v294 = vadd.f32 %v293, %v263
      %v295 = vadd.f32 %v294, %v264
      %v296 = vadd.f32 %v295, %v265
      %v297 = vadd.f32 %v296, %v266
      %v298 = vadd.f32 %v297, %v267
      %v299 = vadd.f32 %v298, %v268
      %v300 = vadd.f32 %v299, %v269
      %v301 = vadd.f32 %v300, %v270
      %v302 = vadd.f32 %v301, %v271
      %v303 = vadd.f32 %v302, %v272
      %v304 = vadd.f32 %v303, %v273
      %v305 = vadd.f32 %v176, %v304
      %s306 = scalar_lea.vmem [#allocation2], 512
      %v307 = vld [vmem:[%s306] sm:$0xff]
      %v308 = vld [vmem:[%s306 + $0x8] sm:$0xff]
      %v309 = vld [vmem:[%s306 + $0x10] sm:$0xff]
      %v310 = vld [vmem:[%s306 + $0x18] sm:$0xff]
      %v311 = vld [vmem:[%s306 + $0x20] sm:$0xff]
      %v312 = vld [vmem:[%s306 + $0x28] sm:$0xff]
      %v313 = vld [vmem:[%s306 + $0x30] sm:$0xff]
      %v314 = vld [vmem:[%s306 + $0x38] sm:$0xff]
      %v315 = vld [vmem:[%s306 + $0x40] sm:$0xff]
      %v316 = vld [vmem:[%s306 + $0x48] sm:$0xff]
      %v317 = vld [vmem:[%s306 + $0x50] sm:$0xff]
      %v318 = vld [vmem:[%s306 + $0x58] sm:$0xff]
      %v319 = vld [vmem:[%s306 + $0x60] sm:$0xff]
      %v320 = vld [vmem:[%s306 + $0x68] sm:$0xff]
      %v321 = vld [vmem:[%s306 + $0x70] sm:$0xff]
      %v322 = vld [vmem:[%s306 + $0x78] sm:$0xff]
      %v323 = vld [vmem:[%s306 + $0x80] sm:$0xff]
      %v324 = vld [vmem:[%s306 + $0x88] sm:$0xff]
      %v325 = vld [vmem:[%s306 + $0x90] sm:$0xff]
      %v326 = vld [vmem:[%s306 + $0x98] sm:$0xff]
      %v327 = vld [vmem:[%s306 + $0xa0] sm:$0xff]
      %v328 = vld [vmem:[%s306 + $0xa8] sm:$0xff]
      %v329 = vld [vmem:[%s306 + $0xb0] sm:$0xff]
      %v330 = vld [vmem:[%s306 + $0xb8] sm:$0xff]
      %v331 = vld [vmem:[%s306 + $0xc0] sm:$0xff]
      %v332 = vld [vmem:[%s306 + $0xc8] sm:$0xff]
      %v333 = vld [vmem:[%s306 + $0xd0] sm:$0xff]
      %v334 = vld [vmem:[%s306 + $0xd8] sm:$0xff]
      %v335 = vld [vmem:[%s306 + $0xe0] sm:$0xff]
      %v336 = vld [vmem:[%s306 + $0xe8] sm:$0xff]
      %v337 = vld [vmem:[%s306 + $0xf0] sm:$0xff]
      %v338 = vld [vmem:[%s306 + $0xf8] sm:$0xff]
      %v339 = vadd.f32 %v307, %v308
      %v340 = vadd.f32 %v339, %v309
      %v341 = vadd.f32 %v340, %v310
      %v342 = vadd.f32 %v341, %v311
      %v343 = vadd.f32 %v342, %v312
      %v344 = vadd.f32 %v343, %v313
      %v345 = vadd.f32 %v344, %v314
      %v346 = vadd.f32 %v345, %v315
      %v347 = vadd.f32 %v346, %v316
      %v348 = vadd.f32 %v347, %v317
      %v349 = vadd.f32 %v348, %v318
      %v350 = vadd.f32 %v349, %v319
      %v351 = vadd.f32 %v350, %v320
      %v352 = vadd.f32 %v351, %v321
      %v353 = vadd.f32 %v352, %v322
      %v354 = vadd.f32 %v353, %v323
      %v355 = vadd.f32 %v354, %v324
      %v356 = vadd.f32 %v355, %v325
      %v357 = vadd.f32 %v356, %v326
      %v358 = vadd.f32 %v357, %v327
      %v359 = vadd.f32 %v358, %v328
      %v360 = vadd.f32 %v359, %v329
      %v361 = vadd.f32 %v360, %v330
      %v362 = vadd.f32 %v361, %v331
      %v363 = vadd.f32 %v362, %v332
      %v364 = vadd.f32 %v363, %v333
      %v365 = vadd.f32 %v364, %v334
      %v366 = vadd.f32 %v365, %v335
      %v367 = vadd.f32 %v366, %v336
      %v368 = vadd.f32 %v367, %v337
      %v369 = vadd.f32 %v368, %v338
      %v370 = vadd.f32 %v241, %v369
      %v371 = vmul.f32 %v307, %v307
      %v372 = vmul.f32 %v308, %v308
      %v373 = vmul.f32 %v309, %v309
      %v374 = vmul.f32 %v310, %v310
      %v375 = vmul.f32 %v311, %v311
      %v376 = vmul.f32 %v312, %v312
      %v377 = vmul.f32 %v313, %v313
      %v378 = vmul.f32 %v314, %v314
      %v379 = vmul.f32 %v315, %v315
      %v380 = vmul.f32 %v316, %v316
      %v381 = vmul.f32 %v317, %v317
      %v382 = vmul.f32 %v318, %v318
      %v383 = vmul.f32 %v319, %v319
      %v384 = vmul.f32 %v320, %v320
      %v385 = vmul.f32 %v321, %v321
      %v386 = vmul.f32 %v322, %v322
      %v387 = vmul.f32 %v323, %v323
      %v388 = vmul.f32 %v324, %v324
      %v389 = vmul.f32 %v325, %v325
      %v390 = vmul.f32 %v326, %v326
      %v391 = vmul.f32 %v327, %v327
      %v392 = vmul.f32 %v328, %v328
      %v393 = vmul.f32 %v329, %v329
      %v394 = vmul.f32 %v330, %v330
      %v395 = vmul.f32 %v331, %v331
      %v396 = vmul.f32 %v332, %v332
      %v397 = vmul.f32 %v333, %v333
      %v398 = vmul.f32 %v334, %v334
      %v399 = vmul.f32 %v335, %v335
      %v400 = vmul.f32 %v336, %v336
      %v401 = vmul.f32 %v337, %v337
      %v402 = vmul.f32 %v338, %v338
      %v403 = vadd.f32 %v371, %v372
      %v404 = vadd.f32 %v403, %v373
      %v405 = vadd.f32 %v404, %v374
      %v406 = vadd.f32 %v405, %v375
      %v407 = vadd.f32 %v406, %v376
      %v408 = vadd.f32 %v407, %v377
      %v409 = vadd.f32 %v408, %v378
      %v410 = vadd.f32 %v409, %v379
      %v411 = vadd.f32 %v410, %v380
      %v412 = vadd.f32 %v411, %v381
      %v413 = vadd.f32 %v412, %v382
      %v414 = vadd.f32 %v413, %v383
      %v415 = vadd.f32 %v414, %v384
      %v416 = vadd.f32 %v415, %v385
      %v417 = vadd.f32 %v416, %v386
      %v418 = vadd.f32 %v417, %v387
      %v419 = vadd.f32 %v418, %v388
      %v420 = vadd.f32 %v419, %v389
      %v421 = vadd.f32 %v420, %v390
      %v422 = vadd.f32 %v421, %v391
      %v423 = vadd.f32 %v422, %v392
      %v424 = vadd.f32 %v423, %v393
      %v425 = vadd.f32 %v424, %v394
      %v426 = vadd.f32 %v425, %v395
      %v427 = vadd.f32 %v426, %v396
      %v428 = vadd.f32 %v427, %v397
      %v429 = vadd.f32 %v428, %v398
      %v430 = vadd.f32 %v429, %v399
      %v431 = vadd.f32 %v430, %v400
      %v432 = vadd.f32 %v431, %v401
      %v433 = vadd.f32 %v432, %v402
      %v434 = vadd.f32 %v305, %v433
      %s435 = scalar_lea.vmem [#allocation2], 768
      %v436 = vld [vmem:[%s435] sm:$0xff]
      %v437 = vld [vmem:[%s435 + $0x8] sm:$0xff]
      %v438 = vld [vmem:[%s435 + $0x10] sm:$0xff]
      %v439 = vld [vmem:[%s435 + $0x18] sm:$0xff]
      %v440 = vld [vmem:[%s435 + $0x20] sm:$0xff]
      %v441 = vld [vmem:[%s435 + $0x28] sm:$0xff]
      %v442 = vld [vmem:[%s435 + $0x30] sm:$0xff]
      %v443 = vld [vmem:[%s435 + $0x38] sm:$0xff]
      %v444 = vld [vmem:[%s435 + $0x40] sm:$0xff]
      %v445 = vld [vmem:[%s435 + $0x48] sm:$0xff]
      %v446 = vld [vmem:[%s435 + $0x50] sm:$0xff]
      %v447 = vld [vmem:[%s435 + $0x58] sm:$0xff]
      %v448 = vld [vmem:[%s435 + $0x60] sm:$0xff]
      %v449 = vld [vmem:[%s435 + $0x68] sm:$0xff]
      %v450 = vld [vmem:[%s435 + $0x70] sm:$0xff]
      %v451 = vld [vmem:[%s435 + $0x78] sm:$0xff]
      %v452 = vld [vmem:[%s435 + $0x80] sm:$0xff]
      %v453 = vld [vmem:[%s435 + $0x88] sm:$0xff]
      %v454 = vld [vmem:[%s435 + $0x90] sm:$0xff]
      %v455 = vld [vmem:[%s435 + $0x98] sm:$0xff]
      %v456 = vld [vmem:[%s435 + $0xa0] sm:$0xff]
      %v457 = vld [vmem:[%s435 + $0xa8] sm:$0xff]
      %v458 = vld [vmem:[%s435 + $0xb0] sm:$0xff]
      %v459 = vld [vmem:[%s435 + $0xb8] sm:$0xff]
      %v460 = vld [vmem:[%s435 + $0xc0] sm:$0xff]
      %v461 = vld [vmem:[%s435 + $0xc8] sm:$0xff]
      %v462 = vld [vmem:[%s435 + $0xd0] sm:$0xff]
      %v463 = vld [vmem:[%s435 + $0xd8] sm:$0xff]
      %v464 = vld [vmem:[%s435 + $0xe0] sm:$0xff]
      %v465 = vld [vmem:[%s435 + $0xe8] sm:$0xff]
      %v466 = vld [vmem:[%s435 + $0xf0] sm:$0xff]
      %v467 = vld [vmem:[%s435 + $0xf8] sm:$0xff]
      %v468 = vadd.f32 %v436, %v437
      %v469 = vadd.f32 %v468, %v438
      %v470 = vadd.f32 %v469, %v439
      %v471 = vadd.f32 %v470, %v440
      %v472 = vadd.f32 %v471, %v441
      %v473 = vadd.f32 %v472, %v442
      %v474 = vadd.f32 %v473, %v443
      %v475 = vadd.f32 %v474, %v444
      %v476 = vadd.f32 %v475, %v445
      %v477 = vadd.f32 %v476, %v446
      %v478 = vadd.f32 %v477, %v447
      %v479 = vadd.f32 %v478, %v448
      %v480 = vadd.f32 %v479, %v449
      %v481 = vadd.f32 %v480, %v450
      %v482 = vadd.f32 %v481, %v451
      %v483 = vadd.f32 %v482, %v452
      %v484 = vadd.f32 %v483, %v453
      %v485 = vadd.f32 %v484, %v454
      %v486 = vadd.f32 %v485, %v455
      %v487 = vadd.f32 %v486, %v456
      %v488 = vadd.f32 %v487, %v457
      %v489 = vadd.f32 %v488, %v458
      %v490 = vadd.f32 %v489, %v459
      %v491 = vadd.f32 %v490, %v460
      %v492 = vadd.f32 %v491, %v461
      %v493 = vadd.f32 %v492, %v462
      %v494 = vadd.f32 %v493, %v463
      %v495 = vadd.f32 %v494, %v464
      %v496 = vadd.f32 %v495, %v465
      %v497 = vadd.f32 %v496, %v466
      %v498 = vadd.f32 %v497, %v467
      %v499 = vadd.f32 %v370, %v498
      %v500 = vmul.f32 %v436, %v436
      %v501 = vmul.f32 %v437, %v437
      %v502 = vmul.f32 %v438, %v438
      %v503 = vmul.f32 %v439, %v439
      %v504 = vmul.f32 %v440, %v440
      %v505 = vmul.f32 %v441, %v441
      %v506 = vmul.f32 %v442, %v442
      %v507 = vmul.f32 %v443, %v443
      %v508 = vmul.f32 %v444, %v444
      %v509 = vmul.f32 %v445, %v445
      %v510 = vmul.f32 %v446, %v446
      %v511 = vmul.f32 %v447, %v447
      %v512 = vmul.f32 %v448, %v448
      %v513 = vmul.f32 %v449, %v449
      %v514 = vmul.f32 %v450, %v450
      %v515 = vmul.f32 %v451, %v451
      %v516 = vmul.f32 %v452, %v452
      %v517 = vmul.f32 %v453, %v453
      %v518 = vmul.f32 %v454, %v454
      %v519 = vmul.f32 %v455, %v455
      %v520 = vmul.f32 %v456, %v456
      %v521 = vmul.f32 %v457, %v457
      %v522 = vmul.f32 %v458, %v458
      %v523 = vmul.f32 %v459, %v459
      %v524 = vmul.f32 %v460, %v460
      %v525 = vmul.f32 %v461, %v461
      %v526 = vmul.f32 %v462, %v462
      %v527 = vmul.f32 %v463, %v463
      %v528 = vmul.f32 %v464, %v464
      %v529 = vmul.f32 %v465, %v465
      %v530 = vmul.f32 %v466, %v466
      %v531 = vmul.f32 %v467, %v467
      %v532 = vadd.f32 %v500, %v501
      %v533 = vadd.f32 %v532, %v502
      %v534 = vadd.f32 %v533, %v503
      %v535 = vadd.f32 %v534, %v504
      %v536 = vadd.f32 %v535, %v505
      %v537 = vadd.f32 %v536, %v506
      %v538 = vadd.f32 %v537, %v507
      %v539 = vadd.f32 %v538, %v508
      %v540 = vadd.f32 %v539, %v509
      %v541 = vadd.f32 %v540, %v510
      %v542 = vadd.f32 %v541, %v511
      %v543 = vadd.f32 %v542, %v512
      %v544 = vadd.f32 %v543, %v513
      %v545 = vadd.f32 %v544, %v514
      %v546 = vadd.f32 %v545, %v515
      %v547 = vadd.f32 %v546, %v516
      %v548 = vadd.f32 %v547, %v517
      %v549 = vadd.f32 %v548, %v518
      %v550 = vadd.f32 %v549, %v519
      %v551 = vadd.f32 %v550, %v520
      %v552 = vadd.f32 %v551, %v521
      %v553 = vadd.f32 %v552, %v522
      %v554 = vadd.f32 %v553, %v523
      %v555 = vadd.f32 %v554, %v524
      %v556 = vadd.f32 %v555, %v525
      %v557 = vadd.f32 %v556, %v526
      %v558 = vadd.f32 %v557, %v527
      %v559 = vadd.f32 %v558, %v528
      %v560 = vadd.f32 %v559, %v529
      %v561 = vadd.f32 %v560, %v530
      %v562 = vadd.f32 %v561, %v531
      %v563 = vadd.f32 %v434, %v562
      %v564 = vld [vmem:[#allocation5] sm:$0xff]
      %v565 = vadd.f32 %v564, %v499
      %566 = vst [vmem:[#allocation5] sm:$0xff] %v565
      %v567 = vld [vmem:[#allocation6] sm:$0xff]
      %v568 = vadd.f32 %v567, %v563
      %569 = vst [vmem:[#allocation6] sm:$0xff] %v568
    $region17: #{tpu_custom_call.1} parent=1 // pred_fallthru
      _
    %p570 = scmp.gt.s32.totalorder %s44, 1024
    // Predicated region
    $region18: #{tpu_custom_call.1} parent=1 // pred_check
      %p571 = pneg %p570
    $region19: #{tpu_custom_call.1} parent=1 // pred_check_branch
      %573 = sbr.rel (%p571) target = $region21
    $region20: #{tpu_custom_call.1} parent=1 // pred_region
      %v574 = vld [vmem:[#allocation2] sm:$0xff]
      %v575 = vld [vmem:[#allocation2 + $0x8] sm:$0xff]
      %v576 = vld [vmem:[#allocation2 + $0x10] sm:$0xff]
      %v577 = vld [vmem:[#allocation2 + $0x18] sm:$0xff]
      %v578 = vld [vmem:[#allocation2 + $0x20] sm:$0xff]
      %v579 = vld [vmem:[#allocation2 + $0x28] sm:$0xff]
      %v580 = vld [vmem:[#allocation2 + $0x30] sm:$0xff]
      %v581 = vld [vmem:[#allocation2 + $0x38] sm:$0xff]
      %v582 = vld [vmem:[#allocation2 + $0x40] sm:$0xff]
      %v583 = vld [vmem:[#allocation2 + $0x48] sm:$0xff]
      %v584 = vld [vmem:[#allocation2 + $0x50] sm:$0xff]
      %v585 = vld [vmem:[#allocation2 + $0x58] sm:$0xff]
      %v586 = vld [vmem:[#allocation2 + $0x60] sm:$0xff]
      %v587 = vld [vmem:[#allocation2 + $0x68] sm:$0xff]
      %v588 = vld [vmem:[#allocation2 + $0x70] sm:$0xff]
      %v589 = vld [vmem:[#allocation2 + $0x78] sm:$0xff]
      %v590 = vld [vmem:[#allocation2 + $0x80] sm:$0xff]
      %v591 = vld [vmem:[#allocation2 + $0x88] sm:$0xff]
      %v592 = vld [vmem:[#allocation2 + $0x90] sm:$0xff]
      %v593 = vld [vmem:[#allocation2 + $0x98] sm:$0xff]
      %v594 = vld [vmem:[#allocation2 + $0xa0] sm:$0xff]
      %v595 = vld [vmem:[#allocation2 + $0xa8] sm:$0xff]
      %v596 = vld [vmem:[#allocation2 + $0xb0] sm:$0xff]
      %v597 = vld [vmem:[#allocation2 + $0xb8] sm:$0xff]
      %v598 = vld [vmem:[#allocation2 + $0xc0] sm:$0xff]
      %v599 = vld [vmem:[#allocation2 + $0xc8] sm:$0xff]
      %v600 = vld [vmem:[#allocation2 + $0xd0] sm:$0xff]
      %v601 = vld [vmem:[#allocation2 + $0xd8] sm:$0xff]
      %v602 = vld [vmem:[#allocation2 + $0xe0] sm:$0xff]
      %v603 = vld [vmem:[#allocation2 + $0xe8] sm:$0xff]
      %v604 = vld [vmem:[#allocation2 + $0xf0] sm:$0xff]
      %v605 = vld [vmem:[#allocation2 + $0xf8] sm:$0xff]
      %s606 = sadd.s32 %s43, 0
      %v607 = vlaneseq
      %v608 = vshrl.u32 %v607, 7
      %v609 = vadd.s32 %v608, 8
      %v610 = vadd.s32 %v608, 16
      %v611 = vadd.s32 %v608, 24
      %v612 = vadd.s32 %v608, 32
      %v613 = vadd.s32 %v608, 40
      %v614 = vadd.s32 %v608, 48
      %v615 = vadd.s32 %v608, 56
      %v616 = vadd.s32 %v608, 64
      %v617 = vadd.s32 %v608, 72
      %v618 = vadd.s32 %v608, 80
      %v619 = vadd.s32 %v608, 88
      %v620 = vadd.s32 %v608, 96
      %v621 = vadd.s32 %v608, 104
      %v622 = vadd.s32 %v608, 112
      %v623 = vadd.s32 %v608, 120
      %v624 = vadd.s32 %v608, 128
      %v625 = vadd.s32 %v608, 136
      %v626 = vadd.s32 %v608, 144
      %v627 = vadd.s32 %v608, 152
      %v628 = vadd.s32 %v608, 160
      %v629 = vadd.s32 %v608, 168
      %v630 = vadd.s32 %v608, 176
      %v631 = vadd.s32 %v608, 184
      %v632 = vadd.s32 %v608, 192
      %v633 = vadd.s32 %v608, 200
      %v634 = vadd.s32 %v608, 208
      %v635 = vadd.s32 %v608, 216
      %v636 = vadd.s32 %v608, 224
      %v637 = vadd.s32 %v608, 232
      %v638 = vadd.s32 %v608, 240
      %v639 = vadd.s32 %v608, 248
      %v640 = vstv %s606
      %v641 = vadd.s32 %v640, %v608
      %v642 = vadd.s32 %v640, %v609
      %v643 = vadd.s32 %v640, %v610
      %v644 = vadd.s32 %v640, %v611
      %v645 = vadd.s32 %v640, %v612
      %v646 = vadd.s32 %v640, %v613
      %v647 = vadd.s32 %v640, %v614
      %v648 = vadd.s32 %v640, %v615
      %v649 = vadd.s32 %v640, %v616
      %v650 = vadd.s32 %v640, %v617
      %v651 = vadd.s32 %v640, %v618
      %v652 = vadd.s32 %v640, %v619
      %v653 = vadd.s32 %v640, %v620
      %v654 = vadd.s32 %v640, %v621
      %v655 = vadd.s32 %v640, %v622
      %v656 = vadd.s32 %v640, %v623
      %v657 = vadd.s32 %v640, %v624
      %v658 = vadd.s32 %v640, %v625
      %v659 = vadd.s32 %v640, %v626
      %v660 = vadd.s32 %v640, %v627
      %v661 = vadd.s32 %v640, %v628
      %v662 = vadd.s32 %v640, %v629
      %v663 = vadd.s32 %v640, %v630
      %v664 = vadd.s32 %v640, %v631
      %v665 = vadd.s32 %v640, %v632
      %v666 = vadd.s32 %v640, %v633
      %v667 = vadd.s32 %v640, %v634
      %v668 = vadd.s32 %v640, %v635
      %v669 = vadd.s32 %v640, %v636
      %v670 = vadd.s32 %v640, %v637
      %v671 = vadd.s32 %v640, %v638
      %v672 = vadd.s32 %v640, %v639
      %vm673 = vcmp.lt.s32.totalorder %v641, 1024
      %vm674 = vcmp.lt.s32.totalorder %v642, 1024
      %vm675 = vcmp.lt.s32.totalorder %v643, 1024
      %vm676 = vcmp.lt.s32.totalorder %v644, 1024
      %vm677 = vcmp.lt.s32.totalorder %v645, 1024
      %vm678 = vcmp.lt.s32.totalorder %v646, 1024
      %vm679 = vcmp.lt.s32.totalorder %v647, 1024
      %vm680 = vcmp.lt.s32.totalorder %v648, 1024
      %vm681 = vcmp.lt.s32.totalorder %v649, 1024
      %vm682 = vcmp.lt.s32.totalorder %v650, 1024
      %vm683 = vcmp.lt.s32.totalorder %v651, 1024
      %vm684 = vcmp.lt.s32.totalorder %v652, 1024
      %vm685 = vcmp.lt.s32.totalorder %v653, 1024
      %vm686 = vcmp.lt.s32.totalorder %v654, 1024
      %vm687 = vcmp.lt.s32.totalorder %v655, 1024
      %vm688 = vcmp.lt.s32.totalorder %v656, 1024
      %vm689 = vcmp.lt.s32.totalorder %v657, 1024
      %vm690 = vcmp.lt.s32.totalorder %v658, 1024
      %vm691 = vcmp.lt.s32.totalorder %v659, 1024
      %vm692 = vcmp.lt.s32.totalorder %v660, 1024
      %vm693 = vcmp.lt.s32.totalorder %v661, 1024
      %vm694 = vcmp.lt.s32.totalorder %v662, 1024
      %vm695 = vcmp.lt.s32.totalorder %v663, 1024
      %vm696 = vcmp.lt.s32.totalorder %v664, 1024
      %vm697 = vcmp.lt.s32.totalorder %v665, 1024
      %vm698 = vcmp.lt.s32.totalorder %v666, 1024
      %vm699 = vcmp.lt.s32.totalorder %v667, 1024
      %vm700 = vcmp.lt.s32.totalorder %v668, 1024
      %vm701 = vcmp.lt.s32.totalorder %v669, 1024
      %vm702 = vcmp.lt.s32.totalorder %v670, 1024
      %vm703 = vcmp.lt.s32.totalorder %v671, 1024
      %vm704 = vcmp.lt.s32.totalorder %v672, 1024
      %v705 = vsel %vm673, %v574, 0.0
      %v706 = vsel %vm674, %v575, 0.0
      %v707 = vsel %vm675, %v576, 0.0
      %v708 = vsel %vm676, %v577, 0.0
      %v709 = vsel %vm677, %v578, 0.0
      %v710 = vsel %vm678, %v579, 0.0
      %v711 = vsel %vm679, %v580, 0.0
      %v712 = vsel %vm680, %v581, 0.0
      %v713 = vsel %vm681, %v582, 0.0
      %v714 = vsel %vm682, %v583, 0.0
      %v715 = vsel %vm683, %v584, 0.0
      %v716 = vsel %vm684, %v585, 0.0
      %v717 = vsel %vm685, %v586, 0.0
      %v718 = vsel %vm686, %v587, 0.0
      %v719 = vsel %vm687, %v588, 0.0
      %v720 = vsel %vm688, %v589, 0.0
      %v721 = vsel %vm689, %v590, 0.0
      %v722 = vsel %vm690, %v591, 0.0
      %v723 = vsel %vm691, %v592, 0.0
      %v724 = vsel %vm692, %v593, 0.0
      %v725 = vsel %vm693, %v594, 0.0
      %v726 = vsel %vm694, %v595, 0.0
      %v727 = vsel %vm695, %v596, 0.0
      %v728 = vsel %vm696, %v597, 0.0
      %v729 = vsel %vm697, %v598, 0.0
      %v730 = vsel %vm698, %v599, 0.0
      %v731 = vsel %vm699, %v600, 0.0
      %v732 = vsel %vm700, %v601, 0.0
      %v733 = vsel %vm701, %v602, 0.0
      %v734 = vsel %vm702, %v603, 0.0
      %v735 = vsel %vm703, %v604, 0.0
      %v736 = vsel %vm704, %v605, 0.0
      %v737 = vadd.f32 %v705, %v706
      %v738 = vadd.f32 %v737, %v707
      %v739 = vadd.f32 %v738, %v708
      %v740 = vadd.f32 %v739, %v709
      %v741 = vadd.f32 %v740, %v710
      %v742 = vadd.f32 %v741, %v711
      %v743 = vadd.f32 %v742, %v712
      %v744 = vadd.f32 %v743, %v713
      %v745 = vadd.f32 %v744, %v714
      %v746 = vadd.f32 %v745, %v715
      %v747 = vadd.f32 %v746, %v716
      %v748 = vadd.f32 %v747, %v717
      %v749 = vadd.f32 %v748, %v718
      %v750 = vadd.f32 %v749, %v719
      %v751 = vadd.f32 %v750, %v720
      %v752 = vadd.f32 %v751, %v721
      %v753 = vadd.f32 %v752, %v722
      %v754 = vadd.f32 %v753, %v723
      %v755 = vadd.f32 %v754, %v724
      %v756 = vadd.f32 %v755, %v725
      %v757 = vadd.f32 %v756, %v726
      %v758 = vadd.f32 %v757, %v727
      %v759 = vadd.f32 %v758, %v728
      %v760 = vadd.f32 %v759, %v729
      %v761 = vadd.f32 %v760, %v730
      %v762 = vadd.f32 %v761, %v731
      %v763 = vadd.f32 %v762, %v732
      %v764 = vadd.f32 %v763, %v733
      %v765 = vadd.f32 %v764, %v734
      %v766 = vadd.f32 %v765, %v735
      %v767 = vadd.f32 %v766, %v736
      %v768 = vadd.f32 %v767, 0.0
      %v769 = vmul.f32 %v705, %v705
      %v770 = vmul.f32 %v706, %v706
      %v771 = vmul.f32 %v707, %v707
      %v772 = vmul.f32 %v708, %v708
      %v773 = vmul.f32 %v709, %v709
      %v774 = vmul.f32 %v710, %v710
      %v775 = vmul.f32 %v711, %v711
      %v776 = vmul.f32 %v712, %v712
      %v777 = vmul.f32 %v713, %v713
      %v778 = vmul.f32 %v714, %v714
      %v779 = vmul.f32 %v715, %v715
      %v780 = vmul.f32 %v716, %v716
      %v781 = vmul.f32 %v717, %v717
      %v782 = vmul.f32 %v718, %v718
      %v783 = vmul.f32 %v719, %v719
      %v784 = vmul.f32 %v720, %v720
      %v785 = vmul.f32 %v721, %v721
      %v786 = vmul.f32 %v722, %v722
      %v787 = vmul.f32 %v723, %v723
      %v788 = vmul.f32 %v724, %v724
      %v789 = vmul.f32 %v725, %v725
      %v790 = vmul.f32 %v726, %v726
      %v791 = vmul.f32 %v727, %v727
      %v792 = vmul.f32 %v728, %v728
      %v793 = vmul.f32 %v729, %v729
      %v794 = vmul.f32 %v730, %v730
      %v795 = vmul.f32 %v731, %v731
      %v796 = vmul.f32 %v732, %v732
      %v797 = vmul.f32 %v733, %v733
      %v798 = vmul.f32 %v734, %v734
      %v799 = vmul.f32 %v735, %v735
      %v800 = vmul.f32 %v736, %v736
      %v801 = vadd.f32 %v769, %v770
      %v802 = vadd.f32 %v801, %v771
      %v803 = vadd.f32 %v802, %v772
      %v804 = vadd.f32 %v803, %v773
      %v805 = vadd.f32 %v804, %v774
      %v806 = vadd.f32 %v805, %v775
      %v807 = vadd.f32 %v806, %v776
      %v808 = vadd.f32 %v807, %v777
      %v809 = vadd.f32 %v808, %v778
      %v810 = vadd.f32 %v809, %v779
      %v811 = vadd.f32 %v810, %v780
      %v812 = vadd.f32 %v811, %v781
      %v813 = vadd.f32 %v812, %v782
      %v814 = vadd.f32 %v813, %v783
      %v815 = vadd.f32 %v814, %v784
      %v816 = vadd.f32 %v815, %v785
      %v817 = vadd.f32 %v816, %v786
      %v818 = vadd.f32 %v817, %v787
      %v819 = vadd.f32 %v818, %v788
      %v820 = vadd.f32 %v819, %v789
      %v821 = vadd.f32 %v820, %v790
      %v822 = vadd.f32 %v821, %v791
      %v823 = vadd.f32 %v822, %v792
      %v824 = vadd.f32 %v823, %v793
      %v825 = vadd.f32 %v824, %v794
      %v826 = vadd.f32 %v825, %v795
      %v827 = vadd.f32 %v826, %v796
      %v828 = vadd.f32 %v827, %v797
      %v829 = vadd.f32 %v828, %v798
      %v830 = vadd.f32 %v829, %v799
      %v831 = vadd.f32 %v830, %v800
      %v832 = vadd.f32 %v831, 0.0
      %s833 = scalar_lea.vmem [#allocation2], 256
      %v834 = vld [vmem:[%s833] sm:$0xff]
      %v835 = vld [vmem:[%s833 + $0x8] sm:$0xff]
      %v836 = vld [vmem:[%s833 + $0x10] sm:$0xff]
      %v837 = vld [vmem:[%s833 + $0x18] sm:$0xff]
      %v838 = vld [vmem:[%s833 + $0x20] sm:$0xff]
      %v839 = vld [vmem:[%s833 + $0x28] sm:$0xff]
      %v840 = vld [vmem:[%s833 + $0x30] sm:$0xff]
      %v841 = vld [vmem:[%s833 + $0x38] sm:$0xff]
      %v842 = vld [vmem:[%s833 + $0x40] sm:$0xff]
      %v843 = vld [vmem:[%s833 + $0x48] sm:$0xff]
      %v844 = vld [vmem:[%s833 + $0x50] sm:$0xff]
      %v845 = vld [vmem:[%s833 + $0x58] sm:$0xff]
      %v846 = vld [vmem:[%s833 + $0x60] sm:$0xff]
      %v847 = vld [vmem:[%s833 + $0x68] sm:$0xff]
      %v848 = vld [vmem:[%s833 + $0x70] sm:$0xff]
      %v849 = vld [vmem:[%s833 + $0x78] sm:$0xff]
      %v850 = vld [vmem:[%s833 + $0x80] sm:$0xff]
      %v851 = vld [vmem:[%s833 + $0x88] sm:$0xff]
      %v852 = vld [vmem:[%s833 + $0x90] sm:$0xff]
      %v853 = vld [vmem:[%s833 + $0x98] sm:$0xff]
      %v854 = vld [vmem:[%s833 + $0xa0] sm:$0xff]
      %v855 = vld [vmem:[%s833 + $0xa8] sm:$0xff]
      %v856 = vld [vmem:[%s833 + $0xb0] sm:$0xff]
      %v857 = vld [vmem:[%s833 + $0xb8] sm:$0xff]
      %v858 = vld [vmem:[%s833 + $0xc0] sm:$0xff]
      %v859 = vld [vmem:[%s833 + $0xc8] sm:$0xff]
      %v860 = vld [vmem:[%s833 + $0xd0] sm:$0xff]
      %v861 = vld [vmem:[%s833 + $0xd8] sm:$0xff]
      %v862 = vld [vmem:[%s833 + $0xe0] sm:$0xff]
      %v863 = vld [vmem:[%s833 + $0xe8] sm:$0xff]
      %v864 = vld [vmem:[%s833 + $0xf0] sm:$0xff]
      %v865 = vld [vmem:[%s833 + $0xf8] sm:$0xff]
      %s866 = sadd.s32 %s43, 256
      %v867 = vstv %s866
      %v868 = vadd.s32 %v867, %v608
      %v869 = vadd.s32 %v867, %v609
      %v870 = vadd.s32 %v867, %v610
      %v871 = vadd.s32 %v867, %v611
      %v872 = vadd.s32 %v867, %v612
      %v873 = vadd.s32 %v867, %v613
      %v874 = vadd.s32 %v867, %v614
      %v875 = vadd.s32 %v867, %v615
      %v876 = vadd.s32 %v867, %v616
      %v877 = vadd.s32 %v867, %v617
      %v878 = vadd.s32 %v867, %v618
      %v879 = vadd.s32 %v867, %v619
      %v880 = vadd.s32 %v867, %v620
      %v881 = vadd.s32 %v867, %v621
      %v882 = vadd.s32 %v867, %v622
      %v883 = vadd.s32 %v867, %v623
      %v884 = vadd.s32 %v867, %v624
      %v885 = vadd.s32 %v867, %v625
      %v886 = vadd.s32 %v867, %v626
      %v887 = vadd.s32 %v867, %v627
      %v888 = vadd.s32 %v867, %v628
      %v889 = vadd.s32 %v867, %v629
      %v890 = vadd.s32 %v867, %v630
      %v891 = vadd.s32 %v867, %v631
      %v892 = vadd.s32 %v867, %v632
      %v893 = vadd.s32 %v867, %v633
      %v894 = vadd.s32 %v867, %v634
      %v895 = vadd.s32 %v867, %v635
      %v896 = vadd.s32 %v867, %v636
      %v897 = vadd.s32 %v867, %v637
      %v898 = vadd.s32 %v867, %v638
      %v899 = vadd.s32 %v867, %v639
      %vm900 = vcmp.lt.s32.totalorder %v868, 1024
      %vm901 = vcmp.lt.s32.totalorder %v869, 1024
      %vm902 = vcmp.lt.s32.totalorder %v870, 1024
      %vm903 = vcmp.lt.s32.totalorder %v871, 1024
      %vm904 = vcmp.lt.s32.totalorder %v872, 1024
      %vm905 = vcmp.lt.s32.totalorder %v873, 1024
      %vm906 = vcmp.lt.s32.totalorder %v874, 1024
      %vm907 = vcmp.lt.s32.totalorder %v875, 1024
      %vm908 = vcmp.lt.s32.totalorder %v876, 1024
      %vm909 = vcmp.lt.s32.totalorder %v877, 1024
      %vm910 = vcmp.lt.s32.totalorder %v878, 1024
      %vm911 = vcmp.lt.s32.totalorder %v879, 1024
      %vm912 = vcmp.lt.s32.totalorder %v880, 1024
      %vm913 = vcmp.lt.s32.totalorder %v881, 1024
      %vm914 = vcmp.lt.s32.totalorder %v882, 1024
      %vm915 = vcmp.lt.s32.totalorder %v883, 1024
      %vm916 = vcmp.lt.s32.totalorder %v884, 1024
      %vm917 = vcmp.lt.s32.totalorder %v885, 1024
      %vm918 = vcmp.lt.s32.totalorder %v886, 1024
      %vm919 = vcmp.lt.s32.totalorder %v887, 1024
      %vm920 = vcmp.lt.s32.totalorder %v888, 1024
      %vm921 = vcmp.lt.s32.totalorder %v889, 1024
      %vm922 = vcmp.lt.s32.totalorder %v890, 1024
      %vm923 = vcmp.lt.s32.totalorder %v891, 1024
      %vm924 = vcmp.lt.s32.totalorder %v892, 1024
      %vm925 = vcmp.lt.s32.totalorder %v893, 1024
      %vm926 = vcmp.lt.s32.totalorder %v894, 1024
      %vm927 = vcmp.lt.s32.totalorder %v895, 1024
      %vm928 = vcmp.lt.s32.totalorder %v896, 1024
      %vm929 = vcmp.lt.s32.totalorder %v897, 1024
      %vm930 = vcmp.lt.s32.totalorder %v898, 1024
      %vm931 = vcmp.lt.s32.totalorder %v899, 1024
      %v932 = vsel %vm900, %v834, 0.0
      %v933 = vsel %vm901, %v835, 0.0
      %v934 = vsel %vm902, %v836, 0.0
      %v935 = vsel %vm903, %v837, 0.0
      %v936 = vsel %vm904, %v838, 0.0
      %v937 = vsel %vm905, %v839, 0.0
      %v938 = vsel %vm906, %v840, 0.0
      %v939 = vsel %vm907, %v841, 0.0
      %v940 = vsel %vm908, %v842, 0.0
      %v941 = vsel %vm909, %v843, 0.0
      %v942 = vsel %vm910, %v844, 0.0
      %v943 = vsel %vm911, %v845, 0.0
      %v944 = vsel %vm912, %v846, 0.0
      %v945 = vsel %vm913, %v847, 0.0
      %v946 = vsel %vm914, %v848, 0.0
      %v947 = vsel %vm915, %v849, 0.0
      %v948 = vsel %vm916, %v850, 0.0
      %v949 = vsel %vm917, %v851, 0.0
      %v950 = vsel %vm918, %v852, 0.0
      %v951 = vsel %vm919, %v853, 0.0
      %v952 = vsel %vm920, %v854, 0.0
      %v953 = vsel %vm921, %v855, 0.0
      %v954 = vsel %vm922, %v856, 0.0
      %v955 = vsel %vm923, %v857, 0.0
      %v956 = vsel %vm924, %v858, 0.0
      %v957 = vsel %vm925, %v859, 0.0
      %v958 = vsel %vm926, %v860, 0.0
      %v959 = vsel %vm927, %v861, 0.0
      %v960 = vsel %vm928, %v862, 0.0
      %v961 = vsel %vm929, %v863, 0.0
      %v962 = vsel %vm930, %v864, 0.0
      %v963 = vsel %vm931, %v865, 0.0
      %v964 = vadd.f32 %v932, %v933
      %v965 = vadd.f32 %v964, %v934
      %v966 = vadd.f32 %v965, %v935
      %v967 = vadd.f32 %v966, %v936
      %v968 = vadd.f32 %v967, %v937
      %v969 = vadd.f32 %v968, %v938
      %v970 = vadd.f32 %v969, %v939
      %v971 = vadd.f32 %v970, %v940
      %v972 = vadd.f32 %v971, %v941
      %v973 = vadd.f32 %v972, %v942
      %v974 = vadd.f32 %v973, %v943
      %v975 = vadd.f32 %v974, %v944
      %v976 = vadd.f32 %v975, %v945
      %v977 = vadd.f32 %v976, %v946
      %v978 = vadd.f32 %v977, %v947
      %v979 = vadd.f32 %v978, %v948
      %v980 = vadd.f32 %v979, %v949
      %v981 = vadd.f32 %v980, %v950
      %v982 = vadd.f32 %v981, %v951
      %v983 = vadd.f32 %v982, %v952
      %v984 = vadd.f32 %v983, %v953
      %v985 = vadd.f32 %v984, %v954
      %v986 = vadd.f32 %v985, %v955
      %v987 = vadd.f32 %v986, %v956
      %v988 = vadd.f32 %v987, %v957
      %v989 = vadd.f32 %v988, %v958
      %v990 = vadd.f32 %v989, %v959
      %v991 = vadd.f32 %v990, %v960
      %v992 = vadd.f32 %v991, %v961
      %v993 = vadd.f32 %v992, %v962
      %v994 = vadd.f32 %v993, %v963
      %v995 = vadd.f32 %v768, %v994
      %v996 = vmul.f32 %v932, %v932
      %v997 = vmul.f32 %v933, %v933
      %v998 = vmul.f32 %v934, %v934
      %v999 = vmul.f32 %v935, %v935
      %v1000 = vmul.f32 %v936, %v936
      %v1001 = vmul.f32 %v937, %v937
      %v1002 = vmul.f32 %v938, %v938
      %v1003 = vmul.f32 %v939, %v939
      %v1004 = vmul.f32 %v940, %v940
      %v1005 = vmul.f32 %v941, %v941
      %v1006 = vmul.f32 %v942, %v942
      %v1007 = vmul.f32 %v943, %v943
      %v1008 = vmul.f32 %v944, %v944
      %v1009 = vmul.f32 %v945, %v945
      %v1010 = vmul.f32 %v946, %v946
      %v1011 = vmul.f32 %v947, %v947
      %v1012 = vmul.f32 %v948, %v948
      %v1013 = vmul.f32 %v949, %v949
      %v1014 = vmul.f32 %v950, %v950
      %v1015 = vmul.f32 %v951, %v951
      %v1016 = vmul.f32 %v952, %v952
      %v1017 = vmul.f32 %v953, %v953
      %v1018 = vmul.f32 %v954, %v954
      %v1019 = vmul.f32 %v955, %v955
      %v1020 = vmul.f32 %v956, %v956
      %v1021 = vmul.f32 %v957, %v957
      %v1022 = vmul.f32 %v958, %v958
      %v1023 = vmul.f32 %v959, %v959
      %v1024 = vmul.f32 %v960, %v960
      %v1025 = vmul.f32 %v961, %v961
      %v1026 = vmul.f32 %v962, %v962
      %v1027 = vmul.f32 %v963, %v963
      %v1028 = vadd.f32 %v996, %v997
      %v1029 = vadd.f32 %v1028, %v998
      %v1030 = vadd.f32 %v1029, %v999
      %v1031 = vadd.f32 %v1030, %v1000
      %v1032 = vadd.f32 %v1031, %v1001
      %v1033 = vadd.f32 %v1032, %v1002
      %v1034 = vadd.f32 %v1033, %v1003
      %v1035 = vadd.f32 %v1034, %v1004
      %v1036 = vadd.f32 %v1035, %v1005
      %v1037 = vadd.f32 %v1036, %v1006
      %v1038 = vadd.f32 %v1037, %v1007
      %v1039 = vadd.f32 %v1038, %v1008
      %v1040 = vadd.f32 %v1039, %v1009
      %v1041 = vadd.f32 %v1040, %v1010
      %v1042 = vadd.f32 %v1041, %v1011
      %v1043 = vadd.f32 %v1042, %v1012
      %v1044 = vadd.f32 %v1043, %v1013
      %v1045 = vadd.f32 %v1044, %v1014
      %v1046 = vadd.f32 %v1045, %v1015
      %v1047 = vadd.f32 %v1046, %v1016
      %v1048 = vadd.f32 %v1047, %v1017
      %v1049 = vadd.f32 %v1048, %v1018
      %v1050 = vadd.f32 %v1049, %v1019
      %v1051 = vadd.f32 %v1050, %v1020
      %v1052 = vadd.f32 %v1051, %v1021
      %v1053 = vadd.f32 %v1052, %v1022
      %v1054 = vadd.f32 %v1053, %v1023
      %v1055 = vadd.f32 %v1054, %v1024
      %v1056 = vadd.f32 %v1055, %v1025
      %v1057 = vadd.f32 %v1056, %v1026
      %v1058 = vadd.f32 %v1057, %v1027
      %v1059 = vadd.f32 %v832, %v1058
      %s1060 = scalar_lea.vmem [#allocation2], 512
      %v1061 = vld [vmem:[%s1060] sm:$0xff]
      %v1062 = vld [vmem:[%s1060 + $0x8] sm:$0xff]
      %v1063 = vld [vmem:[%s1060 + $0x10] sm:$0xff]
      %v1064 = vld [vmem:[%s1060 + $0x18] sm:$0xff]
      %v1065 = vld [vmem:[%s1060 + $0x20] sm:$0xff]
      %v1066 = vld [vmem:[%s1060 + $0x28] sm:$0xff]
      %v1067 = vld [vmem:[%s1060 + $0x30] sm:$0xff]
      %v1068 = vld [vmem:[%s1060 + $0x38] sm:$0xff]
      %v1069 = vld [vmem:[%s1060 + $0x40] sm:$0xff]
      %v1070 = vld [vmem:[%s1060 + $0x48] sm:$0xff]
      %v1071 = vld [vmem:[%s1060 + $0x50] sm:$0xff]
      %v1072 = vld [vmem:[%s1060 + $0x58] sm:$0xff]
      %v1073 = vld [vmem:[%s1060 + $0x60] sm:$0xff]
      %v1074 = vld [vmem:[%s1060 + $0x68] sm:$0xff]
      %v1075 = vld [vmem:[%s1060 + $0x70] sm:$0xff]
      %v1076 = vld [vmem:[%s1060 + $0x78] sm:$0xff]
      %v1077 = vld [vmem:[%s1060 + $0x80] sm:$0xff]
      %v1078 = vld [vmem:[%s1060 + $0x88] sm:$0xff]
      %v1079 = vld [vmem:[%s1060 + $0x90] sm:$0xff]
      %v1080 = vld [vmem:[%s1060 + $0x98] sm:$0xff]
      %v1081 = vld [vmem:[%s1060 + $0xa0] sm:$0xff]
      %v1082 = vld [vmem:[%s1060 + $0xa8] sm:$0xff]
      %v1083 = vld [vmem:[%s1060 + $0xb0] sm:$0xff]
      %v1084 = vld [vmem:[%s1060 + $0xb8] sm:$0xff]
      %v1085 = vld [vmem:[%s1060 + $0xc0] sm:$0xff]
      %v1086 = vld [vmem:[%s1060 + $0xc8] sm:$0xff]
      %v1087 = vld [vmem:[%s1060 + $0xd0] sm:$0xff]
      %v1088 = vld [vmem:[%s1060 + $0xd8] sm:$0xff]
      %v1089 = vld [vmem:[%s1060 + $0xe0] sm:$0xff]
      %v1090 = vld [vmem:[%s1060 + $0xe8] sm:$0xff]
      %v1091 = vld [vmem:[%s1060 + $0xf0] sm:$0xff]
      %v1092 = vld [vmem:[%s1060 + $0xf8] sm:$0xff]
      %s1093 = sadd.s32 %s43, 512
      %v1094 = vstv %s1093
      %v1095 = vadd.s32 %v1094, %v608
      %v1096 = vadd.s32 %v1094, %v609
      %v1097 = vadd.s32 %v1094, %v610
      %v1098 = vadd.s32 %v1094, %v611
      %v1099 = vadd.s32 %v1094, %v612
      %v1100 = vadd.s32 %v1094, %v613
      %v1101 = vadd.s32 %v1094, %v614
      %v1102 = vadd.s32 %v1094, %v615
      %v1103 = vadd.s32 %v1094, %v616
      %v1104 = vadd.s32 %v1094, %v617
      %v1105 = vadd.s32 %v1094, %v618
      %v1106 = vadd.s32 %v1094, %v619
      %v1107 = vadd.s32 %v1094, %v620
      %v1108 = vadd.s32 %v1094, %v621
      %v1109 = vadd.s32 %v1094, %v622
      %v1110 = vadd.s32 %v1094, %v623
      %v1111 = vadd.s32 %v1094, %v624
      %v1112 = vadd.s32 %v1094, %v625
      %v1113 = vadd.s32 %v1094, %v626
      %v1114 = vadd.s32 %v1094, %v627
      %v1115 = vadd.s32 %v1094, %v628
      %v1116 = vadd.s32 %v1094, %v629
      %v1117 = vadd.s32 %v1094, %v630
      %v1118 = vadd.s32 %v1094, %v631
      %v1119 = vadd.s32 %v1094, %v632
      %v1120 = vadd.s32 %v1094, %v633
      %v1121 = vadd.s32 %v1094, %v634
      %v1122 = vadd.s32 %v1094, %v635
      %v1123 = vadd.s32 %v1094, %v636
      %v1124 = vadd.s32 %v1094, %v637
      %v1125 = vadd.s32 %v1094, %v638
      %v1126 = vadd.s32 %v1094, %v639
      %vm1127 = vcmp.lt.s32.totalorder %v1095, 1024
      %vm1128 = vcmp.lt.s32.totalorder %v1096, 1024
      %vm1129 = vcmp.lt.s32.totalorder %v1097, 1024
      %vm1130 = vcmp.lt.s32.totalorder %v1098, 1024
      %vm1131 = vcmp.lt.s32.totalorder %v1099, 1024
      %vm1132 = vcmp.lt.s32.totalorder %v1100, 1024
      %vm1133 = vcmp.lt.s32.totalorder %v1101, 1024
      %vm1134 = vcmp.lt.s32.totalorder %v1102, 1024
      %vm1135 = vcmp.lt.s32.totalorder %v1103, 1024
      %vm1136 = vcmp.lt.s32.totalorder %v1104, 1024
      %vm1137 = vcmp.lt.s32.totalorder %v1105, 1024
      %vm1138 = vcmp.lt.s32.totalorder %v1106, 1024
      %vm1139 = vcmp.lt.s32.totalorder %v1107, 1024
      %vm1140 = vcmp.lt.s32.totalorder %v1108, 1024
      %vm1141 = vcmp.lt.s32.totalorder %v1109, 1024
      %vm1142 = vcmp.lt.s32.totalorder %v1110, 1024
      %vm1143 = vcmp.lt.s32.totalorder %v1111, 1024
      %vm1144 = vcmp.lt.s32.totalorder %v1112, 1024
      %vm1145 = vcmp.lt.s32.totalorder %v1113, 1024
      %vm1146 = vcmp.lt.s32.totalorder %v1114, 1024
      %vm1147 = vcmp.lt.s32.totalorder %v1115, 1024
      %vm1148 = vcmp.lt.s32.totalorder %v1116, 1024
      %vm1149 = vcmp.lt.s32.totalorder %v1117, 1024
      %vm1150 = vcmp.lt.s32.totalorder %v1118, 1024
      %vm1151 = vcmp.lt.s32.totalorder %v1119, 1024
      %vm1152 = vcmp.lt.s32.totalorder %v1120, 1024
      %vm1153 = vcmp.lt.s32.totalorder %v1121, 1024
      %vm1154 = vcmp.lt.s32.totalorder %v1122, 1024
      %vm1155 = vcmp.lt.s32.totalorder %v1123, 1024
      %vm1156 = vcmp.lt.s32.totalorder %v1124, 1024
      %vm1157 = vcmp.lt.s32.totalorder %v1125, 1024
      %vm1158 = vcmp.lt.s32.totalorder %v1126, 1024
      %v1159 = vsel %vm1127, %v1061, 0.0
      %v1160 = vsel %vm1128, %v1062, 0.0
      %v1161 = vsel %vm1129, %v1063, 0.0
      %v1162 = vsel %vm1130, %v1064, 0.0
      %v1163 = vsel %vm1131, %v1065, 0.0
      %v1164 = vsel %vm1132, %v1066, 0.0
      %v1165 = vsel %vm1133, %v1067, 0.0
      %v1166 = vsel %vm1134, %v1068, 0.0
      %v1167 = vsel %vm1135, %v1069, 0.0
      %v1168 = vsel %vm1136, %v1070, 0.0
      %v1169 = vsel %vm1137, %v1071, 0.0
      %v1170 = vsel %vm1138, %v1072, 0.0
      %v1171 = vsel %vm1139, %v1073, 0.0
      %v1172 = vsel %vm1140, %v1074, 0.0
      %v1173 = vsel %vm1141, %v1075, 0.0
      %v1174 = vsel %vm1142, %v1076, 0.0
      %v1175 = vsel %vm1143, %v1077, 0.0
      %v1176 = vsel %vm1144, %v1078, 0.0
      %v1177 = vsel %vm1145, %v1079, 0.0
      %v1178 = vsel %vm1146, %v1080, 0.0
      %v1179 = vsel %vm1147, %v1081, 0.0
      %v1180 = vsel %vm1148, %v1082, 0.0
      %v1181 = vsel %vm1149, %v1083, 0.0
      %v1182 = vsel %vm1150, %v1084, 0.0
      %v1183 = vsel %vm1151, %v1085, 0.0
      %v1184 = vsel %vm1152, %v1086, 0.0
      %v1185 = vsel %vm1153, %v1087, 0.0
      %v1186 = vsel %vm1154, %v1088, 0.0
      %v1187 = vsel %vm1155, %v1089, 0.0
      %v1188 = vsel %vm1156, %v1090, 0.0
      %v1189 = vsel %vm1157, %v1091, 0.0
      %v1190 = vsel %vm1158, %v1092, 0.0
      %v1191 = vadd.f32 %v1159, %v1160
      %v1192 = vadd.f32 %v1191, %v1161
      %v1193 = vadd.f32 %v1192, %v1162
      %v1194 = vadd.f32 %v1193, %v1163
      %v1195 = vadd.f32 %v1194, %v1164
      %v1196 = vadd.f32 %v1195, %v1165
      %v1197 = vadd.f32 %v1196, %v1166
      %v1198 = vadd.f32 %v1197, %v1167
      %v1199 = vadd.f32 %v1198, %v1168
      %v1200 = vadd.f32 %v1199, %v1169
      %v1201 = vadd.f32 %v1200, %v1170
      %v1202 = vadd.f32 %v1201, %v1171
      %v1203 = vadd.f32 %v1202, %v1172
      %v1204 = vadd.f32 %v1203, %v1173
      %v1205 = vadd.f32 %v1204, %v1174
      %v1206 = vadd.f32 %v1205, %v1175
      %v1207 = vadd.f32 %v1206, %v1176
      %v1208 = vadd.f32 %v1207, %v1177
      %v1209 = vadd.f32 %v1208, %v1178
      %v1210 = vadd.f32 %v1209, %v1179
      %v1211 = vadd.f32 %v1210, %v1180
      %v1212 = vadd.f32 %v1211, %v1181
      %v1213 = vadd.f32 %v1212, %v1182
      %v1214 = vadd.f32 %v1213, %v1183
      %v1215 = vadd.f32 %v1214, %v1184
      %v1216 = vadd.f32 %v1215, %v1185
      %v1217 = vadd.f32 %v1216, %v1186
      %v1218 = vadd.f32 %v1217, %v1187
      %v1219 = vadd.f32 %v1218, %v1188
      %v1220 = vadd.f32 %v1219, %v1189
      %v1221 = vadd.f32 %v1220, %v1190
      %v1222 = vadd.f32 %v995, %v1221
      %v1223 = vmul.f32 %v1159, %v1159
      %v1224 = vmul.f32 %v1160, %v1160
      %v1225 = vmul.f32 %v1161, %v1161
      %v1226 = vmul.f32 %v1162, %v1162
      %v1227 = vmul.f32 %v1163, %v1163
      %v1228 = vmul.f32 %v1164, %v1164
      %v1229 = vmul.f32 %v1165, %v1165
      %v1230 = vmul.f32 %v1166, %v1166
      %v1231 = vmul.f32 %v1167, %v1167
      %v1232 = vmul.f32 %v1168, %v1168
      %v1233 = vmul.f32 %v1169, %v1169
      %v1234 = vmul.f32 %v1170, %v1170
      %v1235 = vmul.f32 %v1171, %v1171
      %v1236 = vmul.f32 %v1172, %v1172
      %v1237 = vmul.f32 %v1173, %v1173
      %v1238 = vmul.f32 %v1174, %v1174
      %v1239 = vmul.f32 %v1175, %v1175
      %v1240 = vmul.f32 %v1176, %v1176
      %v1241 = vmul.f32 %v1177, %v1177
      %v1242 = vmul.f32 %v1178, %v1178
      %v1243 = vmul.f32 %v1179, %v1179
      %v1244 = vmul.f32 %v1180, %v1180
      %v1245 = vmul.f32 %v1181, %v1181
      %v1246 = vmul.f32 %v1182, %v1182
      %v1247 = vmul.f32 %v1183, %v1183
      %v1248 = vmul.f32 %v1184, %v1184
      %v1249 = vmul.f32 %v1185, %v1185
      %v1250 = vmul.f32 %v1186, %v1186
      %v1251 = vmul.f32 %v1187, %v1187
      %v1252 = vmul.f32 %v1188, %v1188
      %v1253 = vmul.f32 %v1189, %v1189
      %v1254 = vmul.f32 %v1190, %v1190
      %v1255 = vadd.f32 %v1223, %v1224
      %v1256 = vadd.f32 %v1255, %v1225
      %v1257 = vadd.f32 %v1256, %v1226
      %v1258 = vadd.f32 %v1257, %v1227
      %v1259 = vadd.f32 %v1258, %v1228
      %v1260 = vadd.f32 %v1259, %v1229
      %v1261 = vadd.f32 %v1260, %v1230
      %v1262 = vadd.f32 %v1261, %v1231
      %v1263 = vadd.f32 %v1262, %v1232
      %v1264 = vadd.f32 %v1263, %v1233
      %v1265 = vadd.f32 %v1264, %v1234
      %v1266 = vadd.f32 %v1265, %v1235
      %v1267 = vadd.f32 %v1266, %v1236
      %v1268 = vadd.f32 %v1267, %v1237
      %v1269 = vadd.f32 %v1268, %v1238
      %v1270 = vadd.f32 %v1269, %v1239
      %v1271 = vadd.f32 %v1270, %v1240
      %v1272 = vadd.f32 %v1271, %v1241
      %v1273 = vadd.f32 %v1272, %v1242
      %v1274 = vadd.f32 %v1273, %v1243
      %v1275 = vadd.f32 %v1274, %v1244
      %v1276 = vadd.f32 %v1275, %v1245
      %v1277 = vadd.f32 %v1276, %v1246
      %v1278 = vadd.f32 %v1277, %v1247
      %v1279 = vadd.f32 %v1278, %v1248
      %v1280 = vadd.f32 %v1279, %v1249
      %v1281 = vadd.f32 %v1280, %v1250
      %v1282 = vadd.f32 %v1281, %v1251
      %v1283 = vadd.f32 %v1282, %v1252
      %v1284 = vadd.f32 %v1283, %v1253
      %v1285 = vadd.f32 %v1284, %v1254
      %v1286 = vadd.f32 %v1059, %v1285
      %s1287 = scalar_lea.vmem [#allocation2], 768
      %v1288 = vld [vmem:[%s1287] sm:$0xff]
      %v1289 = vld [vmem:[%s1287 + $0x8] sm:$0xff]
      %v1290 = vld [vmem:[%s1287 + $0x10] sm:$0xff]
      %v1291 = vld [vmem:[%s1287 + $0x18] sm:$0xff]
      %v1292 = vld [vmem:[%s1287 + $0x20] sm:$0xff]
      %v1293 = vld [vmem:[%s1287 + $0x28] sm:$0xff]
      %v1294 = vld [vmem:[%s1287 + $0x30] sm:$0xff]
      %v1295 = vld [vmem:[%s1287 + $0x38] sm:$0xff]
      %v1296 = vld [vmem:[%s1287 + $0x40] sm:$0xff]
      %v1297 = vld [vmem:[%s1287 + $0x48] sm:$0xff]
      %v1298 = vld [vmem:[%s1287 + $0x50] sm:$0xff]
      %v1299 = vld [vmem:[%s1287 + $0x58] sm:$0xff]
      %v1300 = vld [vmem:[%s1287 + $0x60] sm:$0xff]
      %v1301 = vld [vmem:[%s1287 + $0x68] sm:$0xff]
      %v1302 = vld [vmem:[%s1287 + $0x70] sm:$0xff]
      %v1303 = vld [vmem:[%s1287 + $0x78] sm:$0xff]
      %v1304 = vld [vmem:[%s1287 + $0x80] sm:$0xff]
      %v1305 = vld [vmem:[%s1287 + $0x88] sm:$0xff]
      %v1306 = vld [vmem:[%s1287 + $0x90] sm:$0xff]
      %v1307 = vld [vmem:[%s1287 + $0x98] sm:$0xff]
      %v1308 = vld [vmem:[%s1287 + $0xa0] sm:$0xff]
      %v1309 = vld [vmem:[%s1287 + $0xa8] sm:$0xff]
      %v1310 = vld [vmem:[%s1287 + $0xb0] sm:$0xff]
      %v1311 = vld [vmem:[%s1287 + $0xb8] sm:$0xff]
      %v1312 = vld [vmem:[%s1287 + $0xc0] sm:$0xff]
      %v1313 = vld [vmem:[%s1287 + $0xc8] sm:$0xff]
      %v1314 = vld [vmem:[%s1287 + $0xd0] sm:$0xff]
      %v1315 = vld [vmem:[%s1287 + $0xd8] sm:$0xff]
      %v1316 = vld [vmem:[%s1287 + $0xe0] sm:$0xff]
      %v1317 = vld [vmem:[%s1287 + $0xe8] sm:$0xff]
      %v1318 = vld [vmem:[%s1287 + $0xf0] sm:$0xff]
      %v1319 = vld [vmem:[%s1287 + $0xf8] sm:$0xff]
      %s1320 = sadd.s32 %s43, 768
      %v1321 = vstv %s1320
      %v1322 = vadd.s32 %v1321, %v608
      %v1323 = vadd.s32 %v1321, %v609
      %v1324 = vadd.s32 %v1321, %v610
      %v1325 = vadd.s32 %v1321, %v611
      %v1326 = vadd.s32 %v1321, %v612
      %v1327 = vadd.s32 %v1321, %v613
      %v1328 = vadd.s32 %v1321, %v614
      %v1329 = vadd.s32 %v1321, %v615
      %v1330 = vadd.s32 %v1321, %v616
      %v1331 = vadd.s32 %v1321, %v617
      %v1332 = vadd.s32 %v1321, %v618
      %v1333 = vadd.s32 %v1321, %v619
      %v1334 = vadd.s32 %v1321, %v620
      %v1335 = vadd.s32 %v1321, %v621
      %v1336 = vadd.s32 %v1321, %v622
      %v1337 = vadd.s32 %v1321, %v623
      %v1338 = vadd.s32 %v1321, %v624
      %v1339 = vadd.s32 %v1321, %v625
      %v1340 = vadd.s32 %v1321, %v626
      %v1341 = vadd.s32 %v1321, %v627
      %v1342 = vadd.s32 %v1321, %v628
      %v1343 = vadd.s32 %v1321, %v629
      %v1344 = vadd.s32 %v1321, %v630
      %v1345 = vadd.s32 %v1321, %v631
      %v1346 = vadd.s32 %v1321, %v632
      %v1347 = vadd.s32 %v1321, %v633
      %v1348 = vadd.s32 %v1321, %v634
      %v1349 = vadd.s32 %v1321, %v635
      %v1350 = vadd.s32 %v1321, %v636
      %v1351 = vadd.s32 %v1321, %v637
      %v1352 = vadd.s32 %v1321, %v638
      %v1353 = vadd.s32 %v1321, %v639
      %vm1354 = vcmp.lt.s32.totalorder %v1322, 1024
      %vm1355 = vcmp.lt.s32.totalorder %v1323, 1024
      %vm1356 = vcmp.lt.s32.totalorder %v1324, 1024
      %vm1357 = vcmp.lt.s32.totalorder %v1325, 1024
      %vm1358 = vcmp.lt.s32.totalorder %v1326, 1024
      %vm1359 = vcmp.lt.s32.totalorder %v1327, 1024
      %vm1360 = vcmp.lt.s32.totalorder %v1328, 1024
      %vm1361 = vcmp.lt.s32.totalorder %v1329, 1024
      %vm1362 = vcmp.lt.s32.totalorder %v1330, 1024
      %vm1363 = vcmp.lt.s32.totalorder %v1331, 1024
      %vm1364 = vcmp.lt.s32.totalorder %v1332, 1024
      %vm1365 = vcmp.lt.s32.totalorder %v1333, 1024
      %vm1366 = vcmp.lt.s32.totalorder %v1334, 1024
      %vm1367 = vcmp.lt.s32.totalorder %v1335, 1024
      %vm1368 = vcmp.lt.s32.totalorder %v1336, 1024
      %vm1369 = vcmp.lt.s32.totalorder %v1337, 1024
      %vm1370 = vcmp.lt.s32.totalorder %v1338, 1024
      %vm1371 = vcmp.lt.s32.totalorder %v1339, 1024
      %vm1372 = vcmp.lt.s32.totalorder %v1340, 1024
      %vm1373 = vcmp.lt.s32.totalorder %v1341, 1024
      %vm1374 = vcmp.lt.s32.totalorder %v1342, 1024
      %vm1375 = vcmp.lt.s32.totalorder %v1343, 1024
      %vm1376 = vcmp.lt.s32.totalorder %v1344, 1024
      %vm1377 = vcmp.lt.s32.totalorder %v1345, 1024
      %vm1378 = vcmp.lt.s32.totalorder %v1346, 1024
      %vm1379 = vcmp.lt.s32.totalorder %v1347, 1024
      %vm1380 = vcmp.lt.s32.totalorder %v1348, 1024
      %vm1381 = vcmp.lt.s32.totalorder %v1349, 1024
      %vm1382 = vcmp.lt.s32.totalorder %v1350, 1024
      %vm1383 = vcmp.lt.s32.totalorder %v1351, 1024
      %vm1384 = vcmp.lt.s32.totalorder %v1352, 1024
      %vm1385 = vcmp.lt.s32.totalorder %v1353, 1024
      %v1386 = vsel %vm1354, %v1288, 0.0
      %v1387 = vsel %vm1355, %v1289, 0.0
      %v1388 = vsel %vm1356, %v1290, 0.0
      %v1389 = vsel %vm1357, %v1291, 0.0
      %v1390 = vsel %vm1358, %v1292, 0.0
      %v1391 = vsel %vm1359, %v1293, 0.0
      %v1392 = vsel %vm1360, %v1294, 0.0
      %v1393 = vsel %vm1361, %v1295, 0.0
      %v1394 = vsel %vm1362, %v1296, 0.0
      %v1395 = vsel %vm1363, %v1297, 0.0
      %v1396 = vsel %vm1364, %v1298, 0.0
      %v1397 = vsel %vm1365, %v1299, 0.0
      %v1398 = vsel %vm1366, %v1300, 0.0
      %v1399 = vsel %vm1367, %v1301, 0.0
      %v1400 = vsel %vm1368, %v1302, 0.0
      %v1401 = vsel %vm1369, %v1303, 0.0
      %v1402 = vsel %vm1370, %v1304, 0.0
      %v1403 = vsel %vm1371, %v1305, 0.0
      %v1404 = vsel %vm1372, %v1306, 0.0
      %v1405 = vsel %vm1373, %v1307, 0.0
      %v1406 = vsel %vm1374, %v1308, 0.0
      %v1407 = vsel %vm1375, %v1309, 0.0
      %v1408 = vsel %vm1376, %v1310, 0.0
      %v1409 = vsel %vm1377, %v1311, 0.0
      %v1410 = vsel %vm1378, %v1312, 0.0
      %v1411 = vsel %vm1379, %v1313, 0.0
      %v1412 = vsel %vm1380, %v1314, 0.0
      %v1413 = vsel %vm1381, %v1315, 0.0
      %v1414 = vsel %vm1382, %v1316, 0.0
      %v1415 = vsel %vm1383, %v1317, 0.0
      %v1416 = vsel %vm1384, %v1318, 0.0
      %v1417 = vsel %vm1385, %v1319, 0.0
      %v1418 = vadd.f32 %v1386, %v1387
      %v1419 = vadd.f32 %v1418, %v1388
      %v1420 = vadd.f32 %v1419, %v1389
      %v1421 = vadd.f32 %v1420, %v1390
      %v1422 = vadd.f32 %v1421, %v1391
      %v1423 = vadd.f32 %v1422, %v1392
      %v1424 = vadd.f32 %v1423, %v1393
      %v1425 = vadd.f32 %v1424, %v1394
      %v1426 = vadd.f32 %v1425, %v1395
      %v1427 = vadd.f32 %v1426, %v1396
      %v1428 = vadd.f32 %v1427, %v1397
      %v1429 = vadd.f32 %v1428, %v1398
      %v1430 = vadd.f32 %v1429, %v1399
      %v1431 = vadd.f32 %v1430, %v1400
      %v1432 = vadd.f32 %v1431, %v1401
      %v1433 = vadd.f32 %v1432, %v1402
      %v1434 = vadd.f32 %v1433, %v1403
      %v1435 = vadd.f32 %v1434, %v1404
      %v1436 = vadd.f32 %v1435, %v1405
      %v1437 = vadd.f32 %v1436, %v1406
      %v1438 = vadd.f32 %v1437, %v1407
      %v1439 = vadd.f32 %v1438, %v1408
      %v1440 = vadd.f32 %v1439, %v1409
      %v1441 = vadd.f32 %v1440, %v1410
      %v1442 = vadd.f32 %v1441, %v1411
      %v1443 = vadd.f32 %v1442, %v1412
      %v1444 = vadd.f32 %v1443, %v1413
      %v1445 = vadd.f32 %v1444, %v1414
      %v1446 = vadd.f32 %v1445, %v1415
      %v1447 = vadd.f32 %v1446, %v1416
      %v1448 = vadd.f32 %v1447, %v1417
      %v1449 = vadd.f32 %v1222, %v1448
      %v1450 = vmul.f32 %v1386, %v1386
      %v1451 = vmul.f32 %v1387, %v1387
      %v1452 = vmul.f32 %v1388, %v1388
      %v1453 = vmul.f32 %v1389, %v1389
      %v1454 = vmul.f32 %v1390, %v1390
      %v1455 = vmul.f32 %v1391, %v1391
      %v1456 = vmul.f32 %v1392, %v1392
      %v1457 = vmul.f32 %v1393, %v1393
      %v1458 = vmul.f32 %v1394, %v1394
      %v1459 = vmul.f32 %v1395, %v1395
      %v1460 = vmul.f32 %v1396, %v1396
      %v1461 = vmul.f32 %v1397, %v1397
      %v1462 = vmul.f32 %v1398, %v1398
      %v1463 = vmul.f32 %v1399, %v1399
      %v1464 = vmul.f32 %v1400, %v1400
      %v1465 = vmul.f32 %v1401, %v1401
      %v1466 = vmul.f32 %v1402, %v1402
      %v1467 = vmul.f32 %v1403, %v1403
      %v1468 = vmul.f32 %v1404, %v1404
      %v1469 = vmul.f32 %v1405, %v1405
      %v1470 = vmul.f32 %v1406, %v1406
      %v1471 = vmul.f32 %v1407, %v1407
      %v1472 = vmul.f32 %v1408, %v1408
      %v1473 = vmul.f32 %v1409, %v1409
      %v1474 = vmul.f32 %v1410, %v1410
      %v1475 = vmul.f32 %v1411, %v1411
      %v1476 = vmul.f32 %v1412, %v1412
      %v1477 = vmul.f32 %v1413, %v1413
      %v1478 = vmul.f32 %v1414, %v1414
      %v1479 = vmul.f32 %v1415, %v1415
      %v1480 = vmul.f32 %v1416, %v1416
      %v1481 = vmul.f32 %v1417, %v1417
      %v1482 = vadd.f32 %v1450, %v1451
      %v1483 = vadd.f32 %v1482, %v1452
      %v1484 = vadd.f32 %v1483, %v1453
      %v1485 = vadd.f32 %v1484, %v1454
      %v1486 = vadd.f32 %v1485, %v1455
      %v1487 = vadd.f32 %v1486, %v1456
      %v1488 = vadd.f32 %v1487, %v1457
      %v1489 = vadd.f32 %v1488, %v1458
      %v1490 = vadd.f32 %v1489, %v1459
      %v1491 = vadd.f32 %v1490, %v1460
      %v1492 = vadd.f32 %v1491, %v1461
      %v1493 = vadd.f32 %v1492, %v1462
      %v1494 = vadd.f32 %v1493, %v1463
      %v1495 = vadd.f32 %v1494, %v1464
      %v1496 = vadd.f32 %v1495, %v1465
      %v1497 = vadd.f32 %v1496, %v1466
      %v1498 = vadd.f32 %v1497, %v1467
      %v1499 = vadd.f32 %v1498, %v1468
      %v1500 = vadd.f32 %v1499, %v1469
      %v1501 = vadd.f32 %v1500, %v1470
      %v1502 = vadd.f32 %v1501, %v1471
      %v1503 = vadd.f32 %v1502, %v1472
      %v1504 = vadd.f32 %v1503, %v1473
      %v1505 = vadd.f32 %v1504, %v1474
      %v1506 = vadd.f32 %v1505, %v1475
      %v1507 = vadd.f32 %v1506, %v1476
      %v1508 = vadd.f32 %v1507, %v1477
      %v1509 = vadd.f32 %v1508, %v1478
      %v1510 = vadd.f32 %v1509, %v1479
      %v1511 = vadd.f32 %v1510, %v1480
      %v1512 = vadd.f32 %v1511, %v1481
      %v1513 = vadd.f32 %v1286, %v1512
      %v1514 = vld [vmem:[#allocation5] sm:$0xff]
      %v1515 = vadd.f32 %v1514, %v1449
      %1516 = vst [vmem:[#allocation5] sm:$0xff] %v1515
      %v1517 = vld [vmem:[#allocation6] sm:$0xff]
      %v1518 = vadd.f32 %v1517, %v1513
      %1519 = vst [vmem:[#allocation6] sm:$0xff] %v1518
    $region21: #{tpu_custom_call.1} parent=1 // pred_fallthru
      _
    // Predicated region
    $region22: #{tpu_custom_call.1} parent=1 // pred_check
      _
    $region23: #{tpu_custom_call.1} parent=1 // pred_check_branch
      %1521 = sbr.rel (0) target = $region25
    $region24: #{tpu_custom_call.1} parent=1 // pred_region
      %s1523 = ssub.s32 128, 128
      %1524 = vsyncadd [#allocation4], %s1523
      %s1526 = sshll.u32 [#allocation5], 4
      %s1527 = int_to_ptr.vmem [resolvable:$true] %s1526
      %1529 = dma.vmem_to_hbm [thread:$0]  %s1527, 128, %s1, [#allocation4]
    $region25: #{tpu_custom_call.1} parent=1 // pred_fallthru
      _
    // Predicated region
    $region26: #{tpu_custom_call.1} parent=1 // pred_check
      _
    $region27: #{tpu_custom_call.1} parent=1 // pred_check_branch
      %1531 = sbr.rel (0) target = $region29
    $region28: #{tpu_custom_call.1} parent=1 // pred_region
      %s1533 = ssub.s32 128, 128
      %1534 = vsyncadd [#allocation7], %s1533
      %s1536 = sshll.u32 [#allocation6], 4
      %s1537 = int_to_ptr.vmem [resolvable:$true] %s1536
      %1539 = dma.vmem_to_hbm [thread:$0]  %s1537, 128, %s2, [#allocation7]
    $region29: #{tpu_custom_call.1} parent=1 // pred_fallthru
      _
    // Predicated region
    $region30: #{tpu_custom_call.1} parent=1 // pred_check
      _
    $region31: #{tpu_custom_call.1} parent=1 // pred_check_branch
      %1541 = sbr.rel (0) target = $region33
    $region32: #{tpu_custom_call.1} parent=1 // pred_region
      %1542 = dma.done [#allocation4], 128
    $region33: #{tpu_custom_call.1} parent=1 // pred_fallthru
      _
    // Predicated region
    $region34: #{tpu_custom_call.1} parent=1 // pred_check
      _
    $region35: #{tpu_custom_call.1} parent=1 // pred_check_branch
      %1544 = sbr.rel (0) target = $region37
    $region36: #{tpu_custom_call.1} parent=1 // pred_region
      %1545 = dma.done [#allocation7], 128
    $region37: #{tpu_custom_call.1} parent=1 // pred_fallthru
      _
    %1546 = vsyncpa [#allocation3], 1
    %1547 = vsyncpa [#allocation4], 1
    %1548 = vsyncpa [#allocation7], 1

</llo_original>
